<compile_context>
chip_gen: v7x
topology: tpu7x:2x2x1
jax: 0.10.0
libtpu: 0.0.40
codegen_flags: <defaults>
</compile_context>

<pallas_src>
import functools

import jax
import jax.numpy as jnp
from jax.experimental import pallas as pl
from jax.experimental.pallas import tpu as pltpu

NDIM = 3
NVARS = NDIM + 2          # full module result channels (num_species == 0)
NOUT = NDIM + 1           # channels the kernel actually produces (mom x3 + energy)
HALO = 2                  # ghost planes per side along D (radius-2 nested stencil)
T_REF = 300.0             # sim_params.T_ref (state.T is nondimensional)
T0 = 300.0                # reference temperature of the power law
MU_REF = 1.8e-5           # reference dynamic viscosity
K_REF = 2.6e-2            # reference thermal conductivity
PLAW = 0.71               # power-law exponent


# ---------------------------------------------------------------------------
# Kernel
# ---------------------------------------------------------------------------
def _diffusion_kernel(u_ref, t_ref, uh_ref, th_ref, out_ref, *, dx):
  """One D-slab of the diffusion RHS.

  u_ref:  (NDIM, td, H, W)       velocity, interior planes of this tile
  t_ref:  (td, H, W)             temperature, interior planes
  uh_ref: (NDIM, 2*HALO, H, W)   velocity halo planes [lo0, lo1, hi0, hi1]
  th_ref: (2*HALO, H, W)         temperature halo planes
  out_ref: (NOUT, td, H, W)      [rho*ux, rho*uy, rho*uz, rho*E] RHS
  """
  dx0, dx1, dx2 = dx
  H_AX, W_AX = 1, 2                       # sublane / lane axes of 3-D fields
  f32 = jnp.float32
  td = t_ref.shape[0]

  def padded(interior, halo):
    # Stitch the 2 periodic ghost planes per side onto the interior slab.
    # Pure VMEM copy along the major axis (cheap); avoids any HBM re-copy.
    return jnp.concatenate(
        [halo[0:HALO].astype(f32),
         interior.astype(f32),
         halo[HALO:2 * HALO].astype(f32)], axis=0)

  u0_p = padded(u_ref[0], uh_ref[0])      # (td+4, H, W)
  u1_p = padded(u_ref[1], uh_ref[1])
  u2_p = padded(u_ref[2], uh_ref[2])
  T_p = padded(t_ref[...], th_ref[...])

  def d_plane(f, d):
    # central difference along D of an (n,H,W) field -> (n-2,H,W)
    n = f.shape[0]
    return (f[2:n] - f[0:n - 2]) * (0.5 / d)

  def d_roll(f, axis, d):
    # periodic central difference along the (full-extent) H or W axis
    n = f.shape[axis]
    return (pltpu.roll(f, n - 1, axis) - pltpu.roll(f, 1, axis)) * (0.5 / d)

  # padded-frame slices: "extended" = interior +/- 1 plane (extent td+2),
  # "interior" = output planes (extent td)
  e0, e1 = HALO - 1, HALO + td + 1        # extended slice of the padded field
  i0, i1 = 1, 1 + td                      # interior slice of an extended field

  u0_e, u1_e, u2_e = u0_p[e0:e1], u1_p[e0:e1], u2_p[e0:e1]
  T_e = T_p[e0:e1]
  u0_i, u1_i, u2_i = u0_e[i0:i1], u1_e[i0:i1], u2_e[i0:i1]
  T_i = T_e[i0:i1]

  # transport properties: single power-law (EUP) evaluation shared by mu and k
  p_e = jnp.exp(PLAW * jnp.log(T_e * (T_REF / T0)))
  mu_e = MU_REF * p_e
  k_e = K_REF * p_e
  mu_i = mu_e[i0:i1]
  k_i = k_e[i0:i1]

  # velocity gradients g_ab = d_a u_b
  g00_e = d_plane(u0_p, dx0)              # d_D u0   (full padded -> td+2)
  g01_e = d_plane(u1_p, dx0)              # d_D u1
  g02_e = d_plane(u2_p, dx0)              # d_D u2
  gT0_e = d_plane(T_p, dx0)               # d_D T
  g10_e = d_roll(u0_e, H_AX, dx1)         # d_H u0
  g20_e = d_roll(u0_e, W_AX, dx2)         # d_W u0
  g11_e = d_roll(u1_e, H_AX, dx1)         # d_H u1
  g22_e = d_roll(u2_e, W_AX, dx2)         # d_W u2
  divu_e = g00_e + g11_e + g22_e
  g12_i = d_roll(u2_i, H_AX, dx1)         # d_H u2
  g21_i = d_roll(u1_i, W_AX, dx2)         # d_W u1
  g11_i = g11_e[i0:i1]
  g22_i = g22_e[i0:i1]

  # symmetric stress tensor (6 unique components); bulk term hoisted once:
  # tau_ij = mu*(g_ij + g_ji) - (2/3)*mu*divu*delta_ij
  bulk_e = (2.0 / 3.0) * (mu_e * divu_e)
  bulk_i = bulk_e[i0:i1]
  two_mu_e = mu_e + mu_e
  two_mu_i = two_mu_e[i0:i1]
  tau00_e = two_mu_e * g00_e - bulk_e
  tau01_e = mu_e * (g01_e + g10_e)
  tau02_e = mu_e * (g02_e + g20_e)
  tau01_i = tau01_e[i0:i1]
  tau02_i = tau02_e[i0:i1]
  tau11_i = two_mu_i * g11_i - bulk_i
  tau22_i = two_mu_i * g22_i - bulk_i
  tau12_i = mu_i * (g12_i + g21_i)

  # momentum: result[1+a] = sum_b d_b tau_ab
  mom0 = (d_plane(tau00_e, dx0)
          + d_roll(tau01_i, H_AX, dx1) + d_roll(tau02_i, W_AX, dx2))
  mom1 = (d_plane(tau01_e, dx0)
          + d_roll(tau11_i, H_AX, dx1) + d_roll(tau12_i, W_AX, dx2))
  mom2 = (d_plane(tau02_e, dx0)
          + d_roll(tau12_i, H_AX, dx1) + d_roll(tau22_i, W_AX, dx2))

  # energy: viscous work and heat flux fused into ONE flux per direction,
  #   f_b = sum_a tau_ab * u_a + k * dT/dx_b ; energy = sum_b d_b f_b
  fD_e = tau00_e * u0_e + tau01_e * u1_e + tau02_e * u2_e + k_e * gT0_e
  fH_i = (tau01_i * u0_i + tau11_i * u1_i + tau12_i * u2_i
          + k_i * d_roll(T_i, H_AX, dx1))
  fW_i = (tau02_i * u0_i + tau12_i * u1_i + tau22_i * u2_i
          + k_i * d_roll(T_i, W_AX, dx2))
  energy = (d_plane(fD_e, dx0)
            + d_roll(fH_i, H_AX, dx1) + d_roll(fW_i, W_AX, dx2))

  # Continuity channel (identically zero) is NOT written: saves 20% of the
  # output HBM write traffic.
  odt = out_ref.dtype
  out_ref[0] = mom0.astype(odt)
  out_ref[1] = mom1.astype(odt)
  out_ref[2] = mom2.astype(odt)
  out_ref[3] = energy.astype(odt)


# ---------------------------------------------------------------------------
# VMEM-budget / tile selection (generation aware)
# ---------------------------------------------------------------------------
def _vmem_capacity_bytes():
  """Per-TensorCore VMEM capacity (128 MiB on v5e/v6e, 64 MiB on v7x)."""
  try:
    info = pltpu.get_tpu_info()
    cap = getattr(info, "vmem_capacity_bytes", None)
    if cap:
      return int(cap)
  except Exception:
    pass
  return 64 * 1024 * 1024   # conservative fallback (v7x per-TC size)


def _default_vmem_limit():
  cap = _vmem_capacity_bytes()
  # ~96 MiB on 128 MiB parts (v5e/v6e), ~40 MiB on 64 MiB parts (v7x).
  return max(16 * 1024 * 1024, min(3 * cap // 4, cap - 24 * 1024 * 1024))


def _pick_td(D, H, W, in_itemsize, out_itemsize, vmem_budget):
  """Largest divisor of D whose working set fits the VMEM budget.

  Conservative accounting: ~48 live full-tile f32 intermediates per output
  plane plus double-buffered input/output blocks and halo blocks.  Among the
  feasible divisors, prefer an even number of grid steps >= 2 so the
  "parallel" grid axis splits evenly across both TensorCores on v7x (costs at
  most one extra ~0.35 us grid step on single-TC generations).
  """
  plane = H * W
  f32 = 4
  live_tmp = 48
  per_plane = (live_tmp * f32 * plane
               + 2 * (NDIM + 1) * in_itemsize * plane     # in blocks (x2 buffers)
               + 2 * NOUT * out_itemsize * plane)         # out blocks (x2 buffers)
  fixed = (live_tmp * f32 * 2 * HALO * plane              # halo-extended temps
           + 4 * (NDIM + 1) * 2 * HALO * in_itemsize * plane)   # halo blocks
  td_max = max(1, (vmem_budget - fixed) // per_plane)
  divisors = [d for d in range(1, D + 1) if D % d == 0 and d <= td_max]
  if not divisors:
    divisors = [1]
  even_nt = [d for d in divisors if (D // d) >= 2 and (D // d) % 2 == 0]
  multi_nt = [d for d in divisors if (D // d) >= 2]
  pool = even_nt or multi_nt or divisors
  return max(pool)


# ---------------------------------------------------------------------------
# Wrapper
# ---------------------------------------------------------------------------
def diffusion_forward(u, T, dx, td=None, include_continuity=False,
                      vmem_limit_bytes=None, input_buffer_count=None):
  """Pallas entry point.

  Returns the diffusion RHS:
    include_continuity=False (default, fast path): (NDIM + 1, D, H, W)
      [rho*u_x, rho*u_y, rho*u_z, rho*E]; the continuity channel of the
      original module result is identically zero and is treated as implicit.
    include_continuity=True: exact module shape (NDIM + 2, D, H, W) with an
      explicit zero channel 0 prepended in XLA.
  """
  nd, D, H, W = u.shape
  assert nd == NDIM and T.shape == (D, H, W)
  out_dtype = u.dtype   # bf16 in -> bf16 out supported; math is f32 inside.

  if vmem_limit_bytes is None:
    vmem_limit_bytes = _default_vmem_limit()
  if td is None:
    td = _pick_td(D, H, W, jnp.dtype(u.dtype).itemsize,
                  jnp.dtype(out_dtype).itemsize, vmem_limit_bytes)
  assert D % td == 0, "D-tile size must divide D"
  nt = D // td

  # Tiny per-tile periodic halo planes (nt * 2*HALO planes per field) gathered
  # once in XLA -- the bulk of u/T is read in place by the kernel, so there is
  # no full-array re-materialization in HBM.
  starts = jnp.arange(nt) * td
  halo_idx = jnp.concatenate(
      [(starts[:, None] + jnp.arange(-HALO, 0)[None, :]) % D,
       (starts[:, None] + jnp.arange(td, td + HALO)[None, :]) % D],
      axis=1)                                                     # (nt, 2*HALO)
  u_halo = jnp.moveaxis(jnp.take(u, halo_idx, axis=1), 1, 0)      # (nt, NDIM, 2*HALO, H, W)
  T_halo = jnp.take(T, halo_idx, axis=0)                          # (nt, 2*HALO, H, W)

  def _spec(shape, index_map):
    if input_buffer_count is None:
      return pl.BlockSpec(shape, index_map)
    # Optional deeper buffering for exposed-DMA cases (e.g. v5e), off by default.
    return pl.BlockSpec(shape, index_map,
                        pipeline_mode=pl.Buffered(input_buffer_count))

  kernel = functools.partial(_diffusion_kernel,
                             dx=tuple(float(d) for d in dx))
  rhs = pl.pallas_call(
      kernel,
      out_shape=jax.ShapeDtypeStruct((NOUT, D, H, W), out_dtype),
      grid=(nt,),
      in_specs=[
          _spec((NDIM, td, H, W), lambda i: (0, i, 0, 0)),
          _spec((td, H, W), lambda i: (i, 0, 0)),
          pl.BlockSpec((None, NDIM, 2 * HALO, H, W), lambda i: (i, 0, 0, 0, 0)),
          pl.BlockSpec((None, 2 * HALO, H, W), lambda i: (i, 0, 0, 0)),
      ],
      out_specs=pl.BlockSpec((NOUT, td, H, W), lambda i: (0, i, 0, 0)),
      compiler_params=pltpu.CompilerParams(
          dimension_semantics=("parallel",),      # megacore sharding on v7x
          vmem_limit_bytes=int(vmem_limit_bytes),
      ),
  )(u, T, u_halo, T_halo)

  if include_continuity:
    zero = jnp.zeros((1, D, H, W), out_dtype)
    return jnp.concatenate([zero, rhs], axis=0)
  return rhs


# ---------------------------------------------------------------------------
# Pure-JAX reference (straightforward math, jnp.roll stencils, full domain)
# ---------------------------------------------------------------------------
def diffusion_reference(u, T, dx):
  def ddx(f, axis, d):
    return (jnp.roll(f, -1, axis) - jnp.roll(f, 1, axis)) * (0.5 / d)

  T_dim = T * T_REF
  p = jnp.exp(PLAW * jnp.log(T_dim / T0))
  mu = MU_REF * p
  k = K_REF * p

  gradu = [[ddx(u[j], i, dx[i]) for j in range(NDIM)] for i in range(NDIM)]
  divu = gradu[0][0] + gradu[1][1] + gradu[2][2]

  def tau_ij(i, j):
    t = mu * (gradu[i][j] + gradu[j][i])
    if i == j:
      t = t - (2.0 / 3.0) * mu * divu
    return t

  zero = jnp.zeros_like(T)
  result = [zero]
  energy = zero
  for i in range(NDIM):
    mom = zero
    for j in range(NDIM):
      tij = tau_ij(i, j)
      mom = mom + ddx(tij, j, dx[j])
      energy = energy + ddx(tij * u[i], j, dx[j])
    result.append(mom)
  for a in range(NDIM):
    q_a = -k * ddx(T, a, dx[a])
    energy = energy - ddx(q_a, a, dx[a])
  result.append(energy)
  return jnp.stack(result, axis=0)


if __name__ == "__main__":
  D, H, W = 16, 8, 128
  dx = (1.0 / D, 1.0 / H, 1.0 / W)

  key = jax.random.PRNGKey(0)
  ku, kt = jax.random.split(key)
  u = 0.1 * jax.random.normal(ku, (NDIM, D, H, W), dtype=jnp.float32)
  T = jax.random.uniform(kt, (D, H, W), dtype=jnp.float32,
                         minval=0.8, maxval=1.2)

  ref = jax.block_until_ready(diffusion_reference(u, T, dx))

  # Fast path: 4-channel RHS, auto tile selection (td=8 -> 2 D-tiles here).
  out4 = jax.block_until_ready(diffusion_forward(u, T, dx))
  assert out4.shape == (NOUT, D, H, W) and out4.dtype == jnp.float32
  if not bool(jnp.allclose(out4, ref[1:], rtol=1e-3, atol=1e-3)):
    err = float(jnp.max(jnp.abs(out4 - ref[1:])))
    raise AssertionError(f"Pallas kernel mismatch (fast path), max err={err}")

  # Exact module shape, multi-tile halo path (td=4 -> 4 D-tiles).
  out5 = jax.block_until_ready(
      diffusion_forward(u, T, dx, td=4, include_continuity=True))
  assert out5.shape == (NVARS, D, H, W) and out5.dtype == jnp.float32
  if not bool(jnp.allclose(out5, ref, rtol=1e-3, atol=1e-3)):
    err = float(jnp.max(jnp.abs(out5 - ref)))
    raise AssertionError(f"Pallas kernel mismatch (full-shape path), max err={err}")

  print("KERNEL_OK")
</pallas_src>

<mosaic_0001>
module attributes {stable_mosaic.version = 11 : i64} {
  func.func @_diffusion_kernel(%arg0: i32, %arg1: memref<3x8x8x128xf32, #tpu.memory_space<vmem>>, %arg2: memref<8x8x128xf32, #tpu.memory_space<vmem>>, %arg3: memref<1x3x4x8x128xf32, #tpu.memory_space<vmem>>, %arg4: memref<1x4x8x128xf32, #tpu.memory_space<vmem>>, %arg5: memref<4x8x8x128xf32, #tpu.memory_space<vmem>>) attributes {dimension_semantics = [#tpu.dimension_semantics<parallel>], iteration_bounds = array<i64: 2>, scalar_prefetch = 0 : i64, scratch_operands = 0 : i64, tpu.core_type = #tpu.core_type<tc>, window_params = [{transform_indices = @transform_0, window_bounds = array<i64: 3, 8, 8, 128>}, {transform_indices = @transform_1, window_bounds = array<i64: 8, 8, 128>}, {transform_indices = @transform_2, window_bounds = array<i64: 1, 3, 4, 8, 128>}, {transform_indices = @transform_3, window_bounds = array<i64: 1, 4, 8, 128>}, {transform_indices = @transform_4, window_bounds = array<i64: 4, 8, 8, 128>}]} {
    %c0 = arith.constant 0 : index
    %c0_0 = arith.constant 0 : index
    %c0_1 = arith.constant 0 : index
    %c0_2 = arith.constant 0 : index
    %0 = vector.load %arg1[%c0, %c0_0, %c0_1, %c0_2] : memref<3x8x8x128xf32, #tpu.memory_space<vmem>>, vector<1x8x8x128xf32>
    %1 = vector.shape_cast %0 : vector<1x8x8x128xf32> to vector<8x8x128xf32>
    %c0_3 = arith.constant 0 : index
    %c0_4 = arith.constant 0 : index
    %c0_5 = arith.constant 0 : index
    %c0_6 = arith.constant 0 : index
    %c0_7 = arith.constant 0 : index
    %2 = vector.load %arg3[%c0_3, %c0_4, %c0_5, %c0_6, %c0_7] : memref<1x3x4x8x128xf32, #tpu.memory_space<vmem>>, vector<1x1x4x8x128xf32>
    %3 = vector.shape_cast %2 : vector<1x1x4x8x128xf32> to vector<4x8x128xf32>
    %4 = vector.extract_strided_slice %3 {offsets = [0, 0, 0], sizes = [2, 8, 128], strides = [1, 1, 1]} : vector<4x8x128xf32> to vector<2x8x128xf32>
    %5 = vector.extract_strided_slice %3 {offsets = [2, 0, 0], sizes = [2, 8, 128], strides = [1, 1, 1]} : vector<4x8x128xf32> to vector<2x8x128xf32>
    %6 = tpu.concatenate %4, %1, %5 in 0 : vector<2x8x128xf32>, vector<8x8x128xf32>, vector<2x8x128xf32> -> vector<12x8x128xf32>
    %c1 = arith.constant 1 : index
    %c0_8 = arith.constant 0 : index
    %c0_9 = arith.constant 0 : index
    %c0_10 = arith.constant 0 : index
    %7 = vector.load %arg1[%c1, %c0_8, %c0_9, %c0_10] : memref<3x8x8x128xf32, #tpu.memory_space<vmem>>, vector<1x8x8x128xf32>
    %8 = vector.shape_cast %7 : vector<1x8x8x128xf32> to vector<8x8x128xf32>
    %c0_11 = arith.constant 0 : index
    %c1_12 = arith.constant 1 : index
    %c0_13 = arith.constant 0 : index
    %c0_14 = arith.constant 0 : index
    %c0_15 = arith.constant 0 : index
    %9 = vector.load %arg3[%c0_11, %c1_12, %c0_13, %c0_14, %c0_15] : memref<1x3x4x8x128xf32, #tpu.memory_space<vmem>>, vector<1x1x4x8x128xf32>
    %10 = vector.shape_cast %9 : vector<1x1x4x8x128xf32> to vector<4x8x128xf32>
    %11 = vector.extract_strided_slice %10 {offsets = [0, 0, 0], sizes = [2, 8, 128], strides = [1, 1, 1]} : vector<4x8x128xf32> to vector<2x8x128xf32>
    %12 = vector.extract_strided_slice %10 {offsets = [2, 0, 0], sizes = [2, 8, 128], strides = [1, 1, 1]} : vector<4x8x128xf32> to vector<2x8x128xf32>
    %13 = tpu.concatenate %11, %8, %12 in 0 : vector<2x8x128xf32>, vector<8x8x128xf32>, vector<2x8x128xf32> -> vector<12x8x128xf32>
    %c2 = arith.constant 2 : index
    %c0_16 = arith.constant 0 : index
    %c0_17 = arith.constant 0 : index
    %c0_18 = arith.constant 0 : index
    %14 = vector.load %arg1[%c2, %c0_16, %c0_17, %c0_18] : memref<3x8x8x128xf32, #tpu.memory_space<vmem>>, vector<1x8x8x128xf32>
    %15 = vector.shape_cast %14 : vector<1x8x8x128xf32> to vector<8x8x128xf32>
    %c0_19 = arith.constant 0 : index
    %c2_20 = arith.constant 2 : index
    %c0_21 = arith.constant 0 : index
    %c0_22 = arith.constant 0 : index
    %c0_23 = arith.constant 0 : index
    %16 = vector.load %arg3[%c0_19, %c2_20, %c0_21, %c0_22, %c0_23] : memref<1x3x4x8x128xf32, #tpu.memory_space<vmem>>, vector<1x1x4x8x128xf32>
    %17 = vector.shape_cast %16 : vector<1x1x4x8x128xf32> to vector<4x8x128xf32>
    %18 = vector.extract_strided_slice %17 {offsets = [0, 0, 0], sizes = [2, 8, 128], strides = [1, 1, 1]} : vector<4x8x128xf32> to vector<2x8x128xf32>
    %19 = vector.extract_strided_slice %17 {offsets = [2, 0, 0], sizes = [2, 8, 128], strides = [1, 1, 1]} : vector<4x8x128xf32> to vector<2x8x128xf32>
    %20 = tpu.concatenate %18, %15, %19 in 0 : vector<2x8x128xf32>, vector<8x8x128xf32>, vector<2x8x128xf32> -> vector<12x8x128xf32>
    %c0_24 = arith.constant 0 : index
    %c0_25 = arith.constant 0 : index
    %c0_26 = arith.constant 0 : index
    %21 = vector.load %arg2[%c0_24, %c0_25, %c0_26] : memref<8x8x128xf32, #tpu.memory_space<vmem>>, vector<8x8x128xf32>
    %c0_27 = arith.constant 0 : index
    %c0_28 = arith.constant 0 : index
    %c0_29 = arith.constant 0 : index
    %c0_30 = arith.constant 0 : index
    %22 = vector.load %arg4[%c0_27, %c0_28, %c0_29, %c0_30] : memref<1x4x8x128xf32, #tpu.memory_space<vmem>>, vector<1x4x8x128xf32>
    %23 = vector.shape_cast %22 : vector<1x4x8x128xf32> to vector<4x8x128xf32>
    %24 = vector.extract_strided_slice %23 {offsets = [0, 0, 0], sizes = [2, 8, 128], strides = [1, 1, 1]} : vector<4x8x128xf32> to vector<2x8x128xf32>
    %25 = vector.extract_strided_slice %23 {offsets = [2, 0, 0], sizes = [2, 8, 128], strides = [1, 1, 1]} : vector<4x8x128xf32> to vector<2x8x128xf32>
    %26 = tpu.concatenate %24, %21, %25 in 0 : vector<2x8x128xf32>, vector<8x8x128xf32>, vector<2x8x128xf32> -> vector<12x8x128xf32>
    %27 = vector.extract_strided_slice %6 {offsets = [1, 0, 0], sizes = [10, 8, 128], strides = [1, 1, 1]} : vector<12x8x128xf32> to vector<10x8x128xf32>
    %28 = vector.extract_strided_slice %13 {offsets = [1, 0, 0], sizes = [10, 8, 128], strides = [1, 1, 1]} : vector<12x8x128xf32> to vector<10x8x128xf32>
    %29 = vector.extract_strided_slice %20 {offsets = [1, 0, 0], sizes = [10, 8, 128], strides = [1, 1, 1]} : vector<12x8x128xf32> to vector<10x8x128xf32>
    %30 = vector.extract_strided_slice %26 {offsets = [1, 0, 0], sizes = [10, 8, 128], strides = [1, 1, 1]} : vector<12x8x128xf32> to vector<10x8x128xf32>
    %31 = vector.extract_strided_slice %27 {offsets = [1, 0, 0], sizes = [8, 8, 128], strides = [1, 1, 1]} : vector<10x8x128xf32> to vector<8x8x128xf32>
    %32 = vector.extract_strided_slice %28 {offsets = [1, 0, 0], sizes = [8, 8, 128], strides = [1, 1, 1]} : vector<10x8x128xf32> to vector<8x8x128xf32>
    %33 = vector.extract_strided_slice %29 {offsets = [1, 0, 0], sizes = [8, 8, 128], strides = [1, 1, 1]} : vector<10x8x128xf32> to vector<8x8x128xf32>
    %34 = vector.extract_strided_slice %30 {offsets = [1, 0, 0], sizes = [8, 8, 128], strides = [1, 1, 1]} : vector<10x8x128xf32> to vector<8x8x128xf32>
    %cst = arith.constant 1.000000e+00 : f32
    %35 = vector.broadcast %cst : f32 to vector<10x8x128xf32>
    %36 = arith.mulf %30, %35 : vector<10x8x128xf32>
    %37 = math.log %36 : vector<10x8x128xf32>
    %cst_31 = arith.constant 0.709999978 : f32
    %38 = vector.broadcast %cst_31 : f32 to vector<10x8x128xf32>
    %39 = arith.mulf %38, %37 : vector<10x8x128xf32>
    %40 = math.exp %39 : vector<10x8x128xf32>
    %cst_32 = arith.constant 1.800000e-05 : f32
    %41 = vector.broadcast %cst_32 : f32 to vector<10x8x128xf32>
    %42 = arith.mulf %41, %40 : vector<10x8x128xf32>
    %cst_33 = arith.constant 2.600000e-02 : f32
    %43 = vector.broadcast %cst_33 : f32 to vector<10x8x128xf32>
    %44 = arith.mulf %43, %40 : vector<10x8x128xf32>
    %45 = vector.extract_strided_slice %42 {offsets = [1, 0, 0], sizes = [8, 8, 128], strides = [1, 1, 1]} : vector<10x8x128xf32> to vector<8x8x128xf32>
    %46 = vector.extract_strided_slice %44 {offsets = [1, 0, 0], sizes = [8, 8, 128], strides = [1, 1, 1]} : vector<10x8x128xf32> to vector<8x8x128xf32>
    %47 = vector.extract_strided_slice %6 {offsets = [2, 0, 0], sizes = [10, 8, 128], strides = [1, 1, 1]} : vector<12x8x128xf32> to vector<10x8x128xf32>
    %48 = vector.extract_strided_slice %6 {offsets = [0, 0, 0], sizes = [10, 8, 128], strides = [1, 1, 1]} : vector<12x8x128xf32> to vector<10x8x128xf32>
    %49 = arith.subf %47, %48 : vector<10x8x128xf32>
    %cst_34 = arith.constant 8.000000e+00 : f32
    %50 = vector.broadcast %cst_34 : f32 to vector<10x8x128xf32>
    %51 = arith.mulf %49, %50 : vector<10x8x128xf32>
    %52 = vector.extract_strided_slice %13 {offsets = [2, 0, 0], sizes = [10, 8, 128], strides = [1, 1, 1]} : vector<12x8x128xf32> to vector<10x8x128xf32>
    %53 = vector.extract_strided_slice %13 {offsets = [0, 0, 0], sizes = [10, 8, 128], strides = [1, 1, 1]} : vector<12x8x128xf32> to vector<10x8x128xf32>
    %54 = arith.subf %52, %53 : vector<10x8x128xf32>
    %cst_35 = arith.constant 8.000000e+00 : f32
    %55 = vector.broadcast %cst_35 : f32 to vector<10x8x128xf32>
    %56 = arith.mulf %54, %55 : vector<10x8x128xf32>
    %57 = vector.extract_strided_slice %20 {offsets = [2, 0, 0], sizes = [10, 8, 128], strides = [1, 1, 1]} : vector<12x8x128xf32> to vector<10x8x128xf32>
    %58 = vector.extract_strided_slice %20 {offsets = [0, 0, 0], sizes = [10, 8, 128], strides = [1, 1, 1]} : vector<12x8x128xf32> to vector<10x8x128xf32>
    %59 = arith.subf %57, %58 : vector<10x8x128xf32>
    %cst_36 = arith.constant 8.000000e+00 : f32
    %60 = vector.broadcast %cst_36 : f32 to vector<10x8x128xf32>
    %61 = arith.mulf %59, %60 : vector<10x8x128xf32>
    %62 = vector.extract_strided_slice %26 {offsets = [2, 0, 0], sizes = [10, 8, 128], strides = [1, 1, 1]} : vector<12x8x128xf32> to vector<10x8x128xf32>
    %63 = vector.extract_strided_slice %26 {offsets = [0, 0, 0], sizes = [10, 8, 128], strides = [1, 1, 1]} : vector<12x8x128xf32> to vector<10x8x128xf32>
    %64 = arith.subf %62, %63 : vector<10x8x128xf32>
    %cst_37 = arith.constant 8.000000e+00 : f32
    %65 = vector.broadcast %cst_37 : f32 to vector<10x8x128xf32>
    %66 = arith.mulf %64, %65 : vector<10x8x128xf32>
    %c7_i32 = arith.constant 7 : i32
    %67 = tpu.dynamic_rotate %27 by %c7_i32 dim 1 : vector<10x8x128xf32>, i32 -> vector<10x8x128xf32>
    %c1_i32 = arith.constant 1 : i32
    %68 = tpu.dynamic_rotate %27 by %c1_i32 dim 1 : vector<10x8x128xf32>, i32 -> vector<10x8x128xf32>
    %69 = arith.subf %67, %68 : vector<10x8x128xf32>
    %cst_38 = arith.constant 4.000000e+00 : f32
    %70 = vector.broadcast %cst_38 : f32 to vector<10x8x128xf32>
    %71 = arith.mulf %69, %70 : vector<10x8x128xf32>
    %c127_i32 = arith.constant 127 : i32
    %72 = tpu.dynamic_rotate %27 by %c127_i32 dim 2 : vector<10x8x128xf32>, i32 -> vector<10x8x128xf32>
    %c1_i32_39 = arith.constant 1 : i32
    %73 = tpu.dynamic_rotate %27 by %c1_i32_39 dim 2 : vector<10x8x128xf32>, i32 -> vector<10x8x128xf32>
    %74 = arith.subf %72, %73 : vector<10x8x128xf32>
    %cst_40 = arith.constant 6.400000e+01 : f32
    %75 = vector.broadcast %cst_40 : f32 to vector<10x8x128xf32>
    %76 = arith.mulf %74, %75 : vector<10x8x128xf32>
    %c7_i32_41 = arith.constant 7 : i32
    %77 = tpu.dynamic_rotate %28 by %c7_i32_41 dim 1 : vector<10x8x128xf32>, i32 -> vector<10x8x128xf32>
    %c1_i32_42 = arith.constant 1 : i32
    %78 = tpu.dynamic_rotate %28 by %c1_i32_42 dim 1 : vector<10x8x128xf32>, i32 -> vector<10x8x128xf32>
    %79 = arith.subf %77, %78 : vector<10x8x128xf32>
    %cst_43 = arith.constant 4.000000e+00 : f32
    %80 = vector.broadcast %cst_43 : f32 to vector<10x8x128xf32>
    %81 = arith.mulf %79, %80 : vector<10x8x128xf32>
    %c127_i32_44 = arith.constant 127 : i32
    %82 = tpu.dynamic_rotate %29 by %c127_i32_44 dim 2 : vector<10x8x128xf32>, i32 -> vector<10x8x128xf32>
    %c1_i32_45 = arith.constant 1 : i32
    %83 = tpu.dynamic_rotate %29 by %c1_i32_45 dim 2 : vector<10x8x128xf32>, i32 -> vector<10x8x128xf32>
    %84 = arith.subf %82, %83 : vector<10x8x128xf32>
    %cst_46 = arith.constant 6.400000e+01 : f32
    %85 = vector.broadcast %cst_46 : f32 to vector<10x8x128xf32>
    %86 = arith.mulf %84, %85 : vector<10x8x128xf32>
    %87 = arith.addf %51, %81 : vector<10x8x128xf32>
    %88 = arith.addf %87, %86 : vector<10x8x128xf32>
    %c7_i32_47 = arith.constant 7 : i32
    %89 = tpu.dynamic_rotate %33 by %c7_i32_47 dim 1 : vector<8x8x128xf32>, i32 -> vector<8x8x128xf32>
    %c1_i32_48 = arith.constant 1 : i32
    %90 = tpu.dynamic_rotate %33 by %c1_i32_48 dim 1 : vector<8x8x128xf32>, i32 -> vector<8x8x128xf32>
    %91 = arith.subf %89, %90 : vector<8x8x128xf32>
    %cst_49 = arith.constant 4.000000e+00 : f32
    %92 = vector.broadcast %cst_49 : f32 to vector<8x8x128xf32>
    %93 = arith.mulf %91, %92 : vector<8x8x128xf32>
    %c127_i32_50 = arith.constant 127 : i32
    %94 = tpu.dynamic_rotate %32 by %c127_i32_50 dim 2 : vector<8x8x128xf32>, i32 -> vector<8x8x128xf32>
    %c1_i32_51 = arith.constant 1 : i32
    %95 = tpu.dynamic_rotate %32 by %c1_i32_51 dim 2 : vector<8x8x128xf32>, i32 -> vector<8x8x128xf32>
    %96 = arith.subf %94, %95 : vector<8x8x128xf32>
    %cst_52 = arith.constant 6.400000e+01 : f32
    %97 = vector.broadcast %cst_52 : f32 to vector<8x8x128xf32>
    %98 = arith.mulf %96, %97 : vector<8x8x128xf32>
    %99 = vector.extract_strided_slice %81 {offsets = [1, 0, 0], sizes = [8, 8, 128], strides = [1, 1, 1]} : vector<10x8x128xf32> to vector<8x8x128xf32>
    %100 = vector.extract_strided_slice %86 {offsets = [1, 0, 0], sizes = [8, 8, 128], strides = [1, 1, 1]} : vector<10x8x128xf32> to vector<8x8x128xf32>
    %101 = arith.mulf %42, %88 : vector<10x8x128xf32>
    %cst_53 = arith.constant 0.666666686 : f32
    %102 = vector.broadcast %cst_53 : f32 to vector<10x8x128xf32>
    %103 = arith.mulf %102, %101 : vector<10x8x128xf32>
    %104 = vector.extract_strided_slice %103 {offsets = [1, 0, 0], sizes = [8, 8, 128], strides = [1, 1, 1]} : vector<10x8x128xf32> to vector<8x8x128xf32>
    %105 = arith.addf %42, %42 : vector<10x8x128xf32>
    %106 = vector.extract_strided_slice %105 {offsets = [1, 0, 0], sizes = [8, 8, 128], strides = [1, 1, 1]} : vector<10x8x128xf32> to vector<8x8x128xf32>
    %107 = arith.mulf %105, %51 : vector<10x8x128xf32>
    %108 = arith.subf %107, %103 : vector<10x8x128xf32>
    %109 = arith.addf %56, %71 : vector<10x8x128xf32>
    %110 = arith.mulf %42, %109 : vector<10x8x128xf32>
    %111 = arith.addf %61, %76 : vector<10x8x128xf32>
    %112 = arith.mulf %42, %111 : vector<10x8x128xf32>
    %113 = vector.extract_strided_slice %110 {offsets = [1, 0, 0], sizes = [8, 8, 128], strides = [1, 1, 1]} : vector<10x8x128xf32> to vector<8x8x128xf32>
    %114 = vector.extract_strided_slice %112 {offsets = [1, 0, 0], sizes = [8, 8, 128], strides = [1, 1, 1]} : vector<10x8x128xf32> to vector<8x8x128xf32>
    %115 = arith.mulf %106, %99 : vector<8x8x128xf32>
    %116 = arith.subf %115, %104 : vector<8x8x128xf32>
    %117 = arith.mulf %106, %100 : vector<8x8x128xf32>
    %118 = arith.subf %117, %104 : vector<8x8x128xf32>
    %119 = arith.addf %93, %98 : vector<8x8x128xf32>
    %120 = arith.mulf %45, %119 : vector<8x8x128xf32>
    %121 = vector.extract_strided_slice %108 {offsets = [2, 0, 0], sizes = [8, 8, 128], strides = [1, 1, 1]} : vector<10x8x128xf32> to vector<8x8x128xf32>
    %122 = vector.extract_strided_slice %108 {offsets = [0, 0, 0], sizes = [8, 8, 128], strides = [1, 1, 1]} : vector<10x8x128xf32> to vector<8x8x128xf32>
    %123 = arith.subf %121, %122 : vector<8x8x128xf32>
    %cst_54 = arith.constant 8.000000e+00 : f32
    %124 = vector.broadcast %cst_54 : f32 to vector<8x8x128xf32>
    %125 = arith.mulf %123, %124 : vector<8x8x128xf32>
    %c7_i32_55 = arith.constant 7 : i32
    %126 = tpu.dynamic_rotate %113 by %c7_i32_55 dim 1 : vector<8x8x128xf32>, i32 -> vector<8x8x128xf32>
    %c1_i32_56 = arith.constant 1 : i32
    %127 = tpu.dynamic_rotate %113 by %c1_i32_56 dim 1 : vector<8x8x128xf32>, i32 -> vector<8x8x128xf32>
    %128 = arith.subf %126, %127 : vector<8x8x128xf32>
    %cst_57 = arith.constant 4.000000e+00 : f32
    %129 = vector.broadcast %cst_57 : f32 to vector<8x8x128xf32>
    %130 = arith.mulf %128, %129 : vector<8x8x128xf32>
    %131 = arith.addf %125, %130 : vector<8x8x128xf32>
    %c127_i32_58 = arith.constant 127 : i32
    %132 = tpu.dynamic_rotate %114 by %c127_i32_58 dim 2 : vector<8x8x128xf32>, i32 -> vector<8x8x128xf32>
    %c1_i32_59 = arith.constant 1 : i32
    %133 = tpu.dynamic_rotate %114 by %c1_i32_59 dim 2 : vector<8x8x128xf32>, i32 -> vector<8x8x128xf32>
    %134 = arith.subf %132, %133 : vector<8x8x128xf32>
    %cst_60 = arith.constant 6.400000e+01 : f32
    %135 = vector.broadcast %cst_60 : f32 to vector<8x8x128xf32>
    %136 = arith.mulf %134, %135 : vector<8x8x128xf32>
    %137 = arith.addf %131, %136 : vector<8x8x128xf32>
    %138 = vector.extract_strided_slice %110 {offsets = [2, 0, 0], sizes = [8, 8, 128], strides = [1, 1, 1]} : vector<10x8x128xf32> to vector<8x8x128xf32>
    %139 = vector.extract_strided_slice %110 {offsets = [0, 0, 0], sizes = [8, 8, 128], strides = [1, 1, 1]} : vector<10x8x128xf32> to vector<8x8x128xf32>
    %140 = arith.subf %138, %139 : vector<8x8x128xf32>
    %cst_61 = arith.constant 8.000000e+00 : f32
    %141 = vector.broadcast %cst_61 : f32 to vector<8x8x128xf32>
    %142 = arith.mulf %140, %141 : vector<8x8x128xf32>
    %c7_i32_62 = arith.constant 7 : i32
    %143 = tpu.dynamic_rotate %116 by %c7_i32_62 dim 1 : vector<8x8x128xf32>, i32 -> vector<8x8x128xf32>
    %c1_i32_63 = arith.constant 1 : i32
    %144 = tpu.dynamic_rotate %116 by %c1_i32_63 dim 1 : vector<8x8x128xf32>, i32 -> vector<8x8x128xf32>
    %145 = arith.subf %143, %144 : vector<8x8x128xf32>
    %cst_64 = arith.constant 4.000000e+00 : f32
    %146 = vector.broadcast %cst_64 : f32 to vector<8x8x128xf32>
    %147 = arith.mulf %145, %146 : vector<8x8x128xf32>
    %148 = arith.addf %142, %147 : vector<8x8x128xf32>
    %c127_i32_65 = arith.constant 127 : i32
    %149 = tpu.dynamic_rotate %120 by %c127_i32_65 dim 2 : vector<8x8x128xf32>, i32 -> vector<8x8x128xf32>
    %c1_i32_66 = arith.constant 1 : i32
    %150 = tpu.dynamic_rotate %120 by %c1_i32_66 dim 2 : vector<8x8x128xf32>, i32 -> vector<8x8x128xf32>
    %151 = arith.subf %149, %150 : vector<8x8x128xf32>
    %cst_67 = arith.constant 6.400000e+01 : f32
    %152 = vector.broadcast %cst_67 : f32 to vector<8x8x128xf32>
    %153 = arith.mulf %151, %152 : vector<8x8x128xf32>
    %154 = arith.addf %148, %153 : vector<8x8x128xf32>
    %155 = vector.extract_strided_slice %112 {offsets = [2, 0, 0], sizes = [8, 8, 128], strides = [1, 1, 1]} : vector<10x8x128xf32> to vector<8x8x128xf32>
    %156 = vector.extract_strided_slice %112 {offsets = [0, 0, 0], sizes = [8, 8, 128], strides = [1, 1, 1]} : vector<10x8x128xf32> to vector<8x8x128xf32>
    %157 = arith.subf %155, %156 : vector<8x8x128xf32>
    %cst_68 = arith.constant 8.000000e+00 : f32
    %158 = vector.broadcast %cst_68 : f32 to vector<8x8x128xf32>
    %159 = arith.mulf %157, %158 : vector<8x8x128xf32>
    %c7_i32_69 = arith.constant 7 : i32
    %160 = tpu.dynamic_rotate %120 by %c7_i32_69 dim 1 : vector<8x8x128xf32>, i32 -> vector<8x8x128xf32>
    %c1_i32_70 = arith.constant 1 : i32
    %161 = tpu.dynamic_rotate %120 by %c1_i32_70 dim 1 : vector<8x8x128xf32>, i32 -> vector<8x8x128xf32>
    %162 = arith.subf %160, %161 : vector<8x8x128xf32>
    %cst_71 = arith.constant 4.000000e+00 : f32
    %163 = vector.broadcast %cst_71 : f32 to vector<8x8x128xf32>
    %164 = arith.mulf %162, %163 : vector<8x8x128xf32>
    %165 = arith.addf %159, %164 : vector<8x8x128xf32>
    %c127_i32_72 = arith.constant 127 : i32
    %166 = tpu.dynamic_rotate %118 by %c127_i32_72 dim 2 : vector<8x8x128xf32>, i32 -> vector<8x8x128xf32>
    %c1_i32_73 = arith.constant 1 : i32
    %167 = tpu.dynamic_rotate %118 by %c1_i32_73 dim 2 : vector<8x8x128xf32>, i32 -> vector<8x8x128xf32>
    %168 = arith.subf %166, %167 : vector<8x8x128xf32>
    %cst_74 = arith.constant 6.400000e+01 : f32
    %169 = vector.broadcast %cst_74 : f32 to vector<8x8x128xf32>
    %170 = arith.mulf %168, %169 : vector<8x8x128xf32>
    %171 = arith.addf %165, %170 : vector<8x8x128xf32>
    %172 = arith.mulf %108, %27 : vector<10x8x128xf32>
    %173 = arith.mulf %110, %28 : vector<10x8x128xf32>
    %174 = arith.addf %172, %173 : vector<10x8x128xf32>
    %175 = arith.mulf %112, %29 : vector<10x8x128xf32>
    %176 = arith.addf %174, %175 : vector<10x8x128xf32>
    %177 = arith.mulf %44, %66 : vector<10x8x128xf32>
    %178 = arith.addf %176, %177 : vector<10x8x128xf32>
    %179 = arith.mulf %113, %31 : vector<8x8x128xf32>
    %180 = arith.mulf %116, %32 : vector<8x8x128xf32>
    %181 = arith.addf %179, %180 : vector<8x8x128xf32>
    %182 = arith.mulf %120, %33 : vector<8x8x128xf32>
    %183 = arith.addf %181, %182 : vector<8x8x128xf32>
    %c7_i32_75 = arith.constant 7 : i32
    %184 = tpu.dynamic_rotate %34 by %c7_i32_75 dim 1 : vector<8x8x128xf32>, i32 -> vector<8x8x128xf32>
    %c1_i32_76 = arith.constant 1 : i32
    %185 = tpu.dynamic_rotate %34 by %c1_i32_76 dim 1 : vector<8x8x128xf32>, i32 -> vector<8x8x128xf32>
    %186 = arith.subf %184, %185 : vector<8x8x128xf32>
    %cst_77 = arith.constant 4.000000e+00 : f32
    %187 = vector.broadcast %cst_77 : f32 to vector<8x8x128xf32>
    %188 = arith.mulf %186, %187 : vector<8x8x128xf32>
    %189 = arith.mulf %46, %188 : vector<8x8x128xf32>
    %190 = arith.addf %183, %189 : vector<8x8x128xf32>
    %191 = arith.mulf %114, %31 : vector<8x8x128xf32>
    %192 = arith.mulf %120, %32 : vector<8x8x128xf32>
    %193 = arith.addf %191, %192 : vector<8x8x128xf32>
    %194 = arith.mulf %118, %33 : vector<8x8x128xf32>
    %195 = arith.addf %193, %194 : vector<8x8x128xf32>
    %c127_i32_78 = arith.constant 127 : i32
    %196 = tpu.dynamic_rotate %34 by %c127_i32_78 dim 2 : vector<8x8x128xf32>, i32 -> vector<8x8x128xf32>
    %c1_i32_79 = arith.constant 1 : i32
    %197 = tpu.dynamic_rotate %34 by %c1_i32_79 dim 2 : vector<8x8x128xf32>, i32 -> vector<8x8x128xf32>
    %198 = arith.subf %196, %197 : vector<8x8x128xf32>
    %cst_80 = arith.constant 6.400000e+01 : f32
    %199 = vector.broadcast %cst_80 : f32 to vector<8x8x128xf32>
    %200 = arith.mulf %198, %199 : vector<8x8x128xf32>
    %201 = arith.mulf %46, %200 : vector<8x8x128xf32>
    %202 = arith.addf %195, %201 : vector<8x8x128xf32>
    %203 = vector.extract_strided_slice %178 {offsets = [2, 0, 0], sizes = [8, 8, 128], strides = [1, 1, 1]} : vector<10x8x128xf32> to vector<8x8x128xf32>
    %204 = vector.extract_strided_slice %178 {offsets = [0, 0, 0], sizes = [8, 8, 128], strides = [1, 1, 1]} : vector<10x8x128xf32> to vector<8x8x128xf32>
    %205 = arith.subf %203, %204 : vector<8x8x128xf32>
    %cst_81 = arith.constant 8.000000e+00 : f32
    %206 = vector.broadcast %cst_81 : f32 to vector<8x8x128xf32>
    %207 = arith.mulf %205, %206 : vector<8x8x128xf32>
    %c7_i32_82 = arith.constant 7 : i32
    %208 = tpu.dynamic_rotate %190 by %c7_i32_82 dim 1 : vector<8x8x128xf32>, i32 -> vector<8x8x128xf32>
    %c1_i32_83 = arith.constant 1 : i32
    %209 = tpu.dynamic_rotate %190 by %c1_i32_83 dim 1 : vector<8x8x128xf32>, i32 -> vector<8x8x128xf32>
    %210 = arith.subf %208, %209 : vector<8x8x128xf32>
    %cst_84 = arith.constant 4.000000e+00 : f32
    %211 = vector.broadcast %cst_84 : f32 to vector<8x8x128xf32>
    %212 = arith.mulf %210, %211 : vector<8x8x128xf32>
    %213 = arith.addf %207, %212 : vector<8x8x128xf32>
    %c127_i32_85 = arith.constant 127 : i32
    %214 = tpu.dynamic_rotate %202 by %c127_i32_85 dim 2 : vector<8x8x128xf32>, i32 -> vector<8x8x128xf32>
    %c1_i32_86 = arith.constant 1 : i32
    %215 = tpu.dynamic_rotate %202 by %c1_i32_86 dim 2 : vector<8x8x128xf32>, i32 -> vector<8x8x128xf32>
    %216 = arith.subf %214, %215 : vector<8x8x128xf32>
    %cst_87 = arith.constant 6.400000e+01 : f32
    %217 = vector.broadcast %cst_87 : f32 to vector<8x8x128xf32>
    %218 = arith.mulf %216, %217 : vector<8x8x128xf32>
    %219 = arith.addf %213, %218 : vector<8x8x128xf32>
    %c0_88 = arith.constant 0 : index
    %c0_89 = arith.constant 0 : index
    %c0_90 = arith.constant 0 : index
    %c0_91 = arith.constant 0 : index
    %220 = vector.load %arg5[%c0_88, %c0_89, %c0_90, %c0_91] : memref<4x8x8x128xf32, #tpu.memory_space<vmem>>, vector<1x8x8x128xf32>
    %221 = vector.shape_cast %220 : vector<1x8x8x128xf32> to vector<8x8x128xf32>
    %222 = vector.shape_cast %137 : vector<8x8x128xf32> to vector<1x8x8x128xf32>
    tpu.vector_store %arg5[%c0_88, %c0_89, %c0_90, %c0_91], %222 {strides = array<i32>} : memref<4x8x8x128xf32, #tpu.memory_space<vmem>>, vector<1x8x8x128xf32>,
    %c1_92 = arith.constant 1 : index
    %c0_93 = arith.constant 0 : index
    %c0_94 = arith.constant 0 : index
    %c0_95 = arith.constant 0 : index
    %223 = vector.load %arg5[%c1_92, %c0_93, %c0_94, %c0_95] : memref<4x8x8x128xf32, #tpu.memory_space<vmem>>, vector<1x8x8x128xf32>
    %224 = vector.shape_cast %223 : vector<1x8x8x128xf32> to vector<8x8x128xf32>
    %225 = vector.shape_cast %154 : vector<8x8x128xf32> to vector<1x8x8x128xf32>
    tpu.vector_store %arg5[%c1_92, %c0_93, %c0_94, %c0_95], %225 {strides = array<i32>} : memref<4x8x8x128xf32, #tpu.memory_space<vmem>>, vector<1x8x8x128xf32>,
    %c2_96 = arith.constant 2 : index
    %c0_97 = arith.constant 0 : index
    %c0_98 = arith.constant 0 : index
    %c0_99 = arith.constant 0 : index
    %226 = vector.load %arg5[%c2_96, %c0_97, %c0_98, %c0_99] : memref<4x8x8x128xf32, #tpu.memory_space<vmem>>, vector<1x8x8x128xf32>
    %227 = vector.shape_cast %226 : vector<1x8x8x128xf32> to vector<8x8x128xf32>
    %228 = vector.shape_cast %171 : vector<8x8x128xf32> to vector<1x8x8x128xf32>
    tpu.vector_store %arg5[%c2_96, %c0_97, %c0_98, %c0_99], %228 {strides = array<i32>} : memref<4x8x8x128xf32, #tpu.memory_space<vmem>>, vector<1x8x8x128xf32>,
    %c3 = arith.constant 3 : index
    %c0_100 = arith.constant 0 : index
    %c0_101 = arith.constant 0 : index
    %c0_102 = arith.constant 0 : index
    %229 = vector.load %arg5[%c3, %c0_100, %c0_101, %c0_102] : memref<4x8x8x128xf32, #tpu.memory_space<vmem>>, vector<1x8x8x128xf32>
    %230 = vector.shape_cast %229 : vector<1x8x8x128xf32> to vector<8x8x128xf32>
    %231 = vector.shape_cast %219 : vector<8x8x128xf32> to vector<1x8x8x128xf32>
    tpu.vector_store %arg5[%c3, %c0_100, %c0_101, %c0_102], %231 {strides = array<i32>} : memref<4x8x8x128xf32, #tpu.memory_space<vmem>>, vector<1x8x8x128xf32>,
    return
  }
  func.func @transform_0(%arg0: i32) -> (i32, i32, i32, i32) {
    %c0_i32 = arith.constant 0 : i32
    %c0_i32_0 = arith.constant 0 : i32
    %c0_i32_1 = arith.constant 0 : i32
    %c0_i32_2 = arith.constant 0 : i32
    return %c0_i32, %arg0, %c0_i32_0, %c0_i32_1 : i32, i32, i32, i32
  }
  func.func @transform_1(%arg0: i32) -> (i32, i32, i32) {
    %c0_i32 = arith.constant 0 : i32
    %c0_i32_0 = arith.constant 0 : i32
    %c0_i32_1 = arith.constant 0 : i32
    return %arg0, %c0_i32, %c0_i32_0 : i32, i32, i32
  }
  func.func @transform_2(%arg0: i32) -> (i32, i32, i32, i32, i32) {
    %c0_i32 = arith.constant 0 : i32
    %c0_i32_0 = arith.constant 0 : i32
    %c0_i32_1 = arith.constant 0 : i32
    %c0_i32_2 = arith.constant 0 : i32
    %c0_i32_3 = arith.constant 0 : i32
    return %arg0, %c0_i32, %c0_i32_0, %c0_i32_1, %c0_i32_2 : i32, i32, i32, i32, i32
  }
  func.func @transform_3(%arg0: i32) -> (i32, i32, i32, i32) {
    %c0_i32 = arith.constant 0 : i32
    %c0_i32_0 = arith.constant 0 : i32
    %c0_i32_1 = arith.constant 0 : i32
    %c0_i32_2 = arith.constant 0 : i32
    return %arg0, %c0_i32, %c0_i32_0, %c0_i32_1 : i32, i32, i32, i32
  }
  func.func @transform_4(%arg0: i32) -> (i32, i32, i32, i32) {
    %c0_i32 = arith.constant 0 : i32
    %c0_i32_0 = arith.constant 0 : i32
    %c0_i32_1 = arith.constant 0 : i32
    %c0_i32_2 = arith.constant 0 : i32
    return %c0_i32, %arg0, %c0_i32_0, %c0_i32_1 : i32, i32, i32, i32
  }
}

</mosaic_0001>

<llo_original>
// kernel: tpu_custom_call.1
$region0: #{tpu_custom_call.1}
  #allocation0 [shape = 'u32[]', space=smem, size = 0x4, offset = 0x4, fixed_abs, tag = 'smem constant byte address 0x4 - core index']
  #allocation1 [shape = 'u32[144,128]{1,0:T(1,128)}', space=vmem, size = 0x12000, scoped, tag = 'internal scratch']
  #allocation11 [shape = 's32[]', space=sflag, size = 0x4, offset = 0, fixed_abs, tag = 'sflag constant byte address 0x0 - dummy sync flag']
  #allocation13 [shape = 's32[]', space=sflag, size = 0x4, offset = 0, fixed_abs, tag = 'sflag constant byte address 0x0 - dummy sync flag']
  %s0 = inlined_call_operand.hbm [shape: f32[3,16,8,128], index: 0, kind: input, shape index: {}]
  %s1 = inlined_call_operand.hbm [shape: f32[16,8,128], index: 1, kind: input, shape index: {}]
  %s2 = inlined_call_operand.hbm [shape: f32[2,3,4,8,128], index: 2, kind: input, shape index: {}]
  %s3 = inlined_call_operand.hbm [shape: f32[2,4,8,128], index: 3, kind: input, shape index: {}]
  %s4 = inlined_call_operand.hbm [shape: f32[4,16,8,128], index: 4, kind: output, shape index: {}]
  %s5 = sld [smem:[#allocation0]]
  $region65: #{tpu_custom_call.1} parent=0
    _
  %s7 = ssub.s32 1, %s5
  %s8 = scalar_select 0, %s7, %s5
  $region1: #{tpu_custom_call.1} parent=0
    #allocation2 [shape = 'u8[196608]{0}', space=vmem, size = 0x30000, scoped, tag = 'input window, operand 0']
    #allocation3 [shape = 's32[2]{0}', space=sflag, size = 0x8, scoped, tag = 'scoped memory for tpu_custom_call.1']
    #allocation4 [shape = 's32[2]{0}', space=sflag, size = 0x8, scoped, tag = 'scoped memory for tpu_custom_call.1']
    #allocation5 [shape = 'u8[65536]{0}', space=vmem, size = 0x10000, scoped, tag = 'input window, operand 1']
    #allocation6 [shape = 's32[2]{0}', space=sflag, size = 0x8, scoped, tag = 'scoped memory for tpu_custom_call.1']
    #allocation7 [shape = 'u8[98304]{0}', space=vmem, size = 0x18000, scoped, tag = 'input window, operand 2']
    #allocation8 [shape = 'u8[32768]{0}', space=vmem, size = 0x8000, scoped, tag = 'input window, operand 3']
    #allocation9 [shape = 's32[2]{0}', space=sflag, size = 0x8, scoped, tag = 'scoped memory for tpu_custom_call.1']
    #allocation10 [shape = 'u8[262144]{0}', space=vmem, size = 0x40000, scoped, tag = 'output window, operand 0']
    %9 = vsyncpa [#allocation3], 0
    %s10 = scalar_lea.sflag [#allocation3], 1
    %11 = vsyncpa %s10, 0
    %12 = vsyncpa [#allocation6], 0
    %s13 = scalar_lea.sflag [#allocation6], 1
    %14 = vsyncpa %s13, 0
    %15 = vsyncpa [#allocation9], 0
    %s16 = scalar_lea.sflag [#allocation9], 1
    %17 = vsyncpa %s16, 0
    %18 = vsyncpa [#allocation4], 0
    %s19 = scalar_lea.sflag [#allocation4], 1
    %20 = vsyncpa %s19, 0
    loop: start=0, step=1, limit=4
    $region2: #{tpu_custom_call.1} parent=1 // loop_pre_header
      _
    $region3: #{tpu_custom_call.1} parent=1 // loop_header
      %s22 = sphi 0, %s26
      %p23 = scmp.ge.s32.totalorder %s22, 4
      %s32 = sphi 0, %s34
      %s35 = sphi 0, %s32
      %s36 = sphi 0, %s35
      %s52 = sphi 0, %s36
      %s58 = sphi 0, %s60
      %s61 = sphi 0, %s58
      %s62 = sphi 0, %s61
      %s78 = sphi 0, %s62
      %s84 = sphi 0, %s86
      %s87 = sphi 0, %s84
      %s88 = sphi 0, %s87
      %s104 = sphi 0, %s88
      %s110 = sphi 0, %s112
      %s113 = sphi 0, %s110
      %s114 = sphi 0, %s113
      %s130 = sphi 0, %s114
      %s136 = sphi 0, %s138
      %s139 = sphi 0, %s136
      %s140 = sphi 0, %s139
      %s156 = sphi 0, %s140
    $region4: #{tpu_custom_call.1} parent=1 // loop_header_branch
      %25 = sbr.rel (%p23) target = $region8
    $region5: #{tpu_custom_call.1} parent=1 // loop_body
      %s27 = ssub.s32 %s22, 1
      %s28 = ssub.s32 %s22, 2
      %s29 = sadd.s32 %s22, 1
      %s30 = ssub.s32 %s22, %s29
      %p31 = scmp.eq.s32.totalorder %s30, 0
      %s33 = sadd.s32 %s32, 1
      %s34 = scalar_select %p31, %s32, %s33
      %p37 = pneg %p31
      %p38 = scmp.eq.s32.totalorder %s22, 1
      %p39 = por %p37, %p38
      %p40 = scmp.ne.s32.totalorder %s32, %s35
      %p41 = scmp.eq.s32.totalorder %s22, 0
      %p42 = por %p40, %p41
      %p43 = scmp.ne.s32.totalorder %s32, %s35
      %p44 = scmp.eq.s32.totalorder %s27, 1
      %p45 = por %p43, %p44
      %p46 = scmp.ne.s32.totalorder %s35, %s36
      %p47 = scmp.eq.s32.totalorder %s27, 0
      %p48 = por %p46, %p47
      %p49 = scmp.ne.s32.totalorder %s35, %s36
      %p50 = scmp.eq.s32.totalorder %s28, 1
      %p51 = por %p49, %p50
      %p53 = scmp.ne.s32.totalorder %s36, %s52
      %p54 = scmp.eq.s32.totalorder %s28, 0
      %p55 = por %p53, %p54
      %s56 = ssub.s32 %s22, %s29
      %p57 = scmp.eq.s32.totalorder %s56, 0
      %s59 = sadd.s32 %s58, 1
      %s60 = scalar_select %p57, %s58, %s59
      %p63 = pneg %p57
      %p64 = scmp.eq.s32.totalorder %s22, 1
      %p65 = por %p63, %p64
      %p66 = scmp.ne.s32.totalorder %s58, %s61
      %p67 = scmp.eq.s32.totalorder %s22, 0
      %p68 = por %p66, %p67
      %p69 = scmp.ne.s32.totalorder %s58, %s61
      %p70 = scmp.eq.s32.totalorder %s27, 1
      %p71 = por %p69, %p70
      %p72 = scmp.ne.s32.totalorder %s61, %s62
      %p73 = scmp.eq.s32.totalorder %s27, 0
      %p74 = por %p72, %p73
      %p75 = scmp.ne.s32.totalorder %s61, %s62
      %p76 = scmp.eq.s32.totalorder %s28, 1
      %p77 = por %p75, %p76
      %p79 = scmp.ne.s32.totalorder %s62, %s78
      %p80 = scmp.eq.s32.totalorder %s28, 0
      %p81 = por %p79, %p80
      %s82 = ssub.s32 %s22, %s29
      %p83 = scmp.eq.s32.totalorder %s82, 0
      %s85 = sadd.s32 %s84, 1
      %s86 = scalar_select %p83, %s84, %s85
      %p89 = pneg %p83
      %p90 = scmp.eq.s32.totalorder %s22, 1
      %p91 = por %p89, %p90
      %p92 = scmp.ne.s32.totalorder %s84, %s87
      %p93 = scmp.eq.s32.totalorder %s22, 0
      %p94 = por %p92, %p93
      %p95 = scmp.ne.s32.totalorder %s84, %s87
      %p96 = scmp.eq.s32.totalorder %s27, 1
      %p97 = por %p95, %p96
      %p98 = scmp.ne.s32.totalorder %s87, %s88
      %p99 = scmp.eq.s32.totalorder %s27, 0
      %p100 = por %p98, %p99
      %p101 = scmp.ne.s32.totalorder %s87, %s88
      %p102 = scmp.eq.s32.totalorder %s28, 1
      %p103 = por %p101, %p102
      %p105 = scmp.ne.s32.totalorder %s88, %s104
      %p106 = scmp.eq.s32.totalorder %s28, 0
      %p107 = por %p105, %p106
      %s108 = ssub.s32 %s22, %s29
      %p109 = scmp.eq.s32.totalorder %s108, 0
      %s111 = sadd.s32 %s110, 1
      %s112 = scalar_select %p109, %s110, %s111
      %p115 = pneg %p109
      %p116 = scmp.eq.s32.totalorder %s22, 1
      %p117 = por %p115, %p116
      %p118 = scmp.ne.s32.totalorder %s110, %s113
      %p119 = scmp.eq.s32.totalorder %s22, 0
      %p120 = por %p118, %p119
      %p121 = scmp.ne.s32.totalorder %s110, %s113
      %p122 = scmp.eq.s32.totalorder %s27, 1
      %p123 = por %p121, %p122
      %p124 = scmp.ne.s32.totalorder %s113, %s114
      %p125 = scmp.eq.s32.totalorder %s27, 0
      %p126 = por %p124, %p125
      %p127 = scmp.ne.s32.totalorder %s113, %s114
      %p128 = scmp.eq.s32.totalorder %s28, 1
      %p129 = por %p127, %p128
      %p131 = scmp.ne.s32.totalorder %s114, %s130
      %p132 = scmp.eq.s32.totalorder %s28, 0
      %p133 = por %p131, %p132
      %s134 = ssub.s32 %s22, %s29
      %p135 = scmp.eq.s32.totalorder %s134, 0
      %s137 = sadd.s32 %s136, 1
      %s138 = scalar_select %p135, %s136, %s137
      %p141 = pneg %p135
      %p142 = scmp.eq.s32.totalorder %s22, 1
      %p143 = por %p141, %p142
      %p144 = scmp.ne.s32.totalorder %s136, %s139
      %p145 = scmp.eq.s32.totalorder %s22, 0
      %p146 = por %p144, %p145
      %p147 = scmp.ne.s32.totalorder %s136, %s139
      %p148 = scmp.eq.s32.totalorder %s27, 1
      %p149 = por %p147, %p148
      %p150 = scmp.ne.s32.totalorder %s139, %s140
      %p151 = scmp.eq.s32.totalorder %s27, 0
      %p152 = por %p150, %p151
      %p153 = scmp.ne.s32.totalorder %s139, %s140
      %p154 = scmp.eq.s32.totalorder %s28, 1
      %p155 = por %p153, %p154
      %p157 = scmp.ne.s32.totalorder %s140, %s156
      %p158 = scmp.eq.s32.totalorder %s28, 0
      %p159 = por %p157, %p158
      %p160 = scmp.le.s32.totalorder 1, %s22
      %p161 = scmp.lt.s32.totalorder %s22, 3
      %p162 = pnand %p160, %p161
      %p163 = pneg %p162
      // Predicated region
      $region9: #{tpu_custom_call.1} parent=5 // pred_check
        _
      $region10: #{tpu_custom_call.1} parent=5 // pred_check_branch
        %165 = sbr.rel (%p162) target = $region12
      $region11: #{tpu_custom_call.1} parent=5 // pred_region
        %s166 = ssub.s32 %s22, 1
      $region12: #{tpu_custom_call.1} parent=5 // pred_fallthru
        _
      %p167 = scmp.lt.s32.totalorder %s22, 2
      // Predicated region
      $region13: #{tpu_custom_call.1} parent=5 // pred_check
        %p168 = pneg %p167
      $region14: #{tpu_custom_call.1} parent=5 // pred_check_branch
        %170 = sbr.rel (%p168) target = $region16
      $region15: #{tpu_custom_call.1} parent=5 // pred_region
        // Predicated region
        $region17: #{tpu_custom_call.1} parent=15 // pred_check
          %p171 = pneg %p42
        $region18: #{tpu_custom_call.1} parent=15 // pred_check_branch
          %173 = sbr.rel (%p171) target = $region20
        $region19: #{tpu_custom_call.1} parent=15 // pred_region
          #allocation12 [shape = 'u32[6]{0}', space=smem, size = 0x18, scoped, tag = 'DMA stride descriptor']
          %s174 = sand.u32 %s32, 1
          %s175 = scalar_lea.sflag [#allocation3], %s174
          %s176 = sand.u32 %s32, 1
          %s177 = smul.addr %s176, 192
          %s178 = scalar_lea.vmem [#allocation2], %s177
          %s179 = smul.u32 8, %s22
          %s181 = ssub.s32 3072, 3072
          %182 = vsyncadd %s175, %s181
          %s183 = smul.addr %s179, 128
          %s184 = scalar_lea.hbm %s0, %s183
          %s186 = sshll.u32 1, 14
          %s187 = sxor.u32 4294967295, %s186
          %s189 = sld [smem:[#allocation0]]
          %s190 = sadd.s32 2, %s189
          %s192 = sshll.u32 7, 26
          %s193 = sxor.u32 4294967295, %s192
          %s194 = sand.u32 0, %s193
          %s195 = sshll.u32 %s190, 26
          %s196 = sor.u32 %s194, %s195
          %s197 = sshll.u32 %s178, 4
          %s198 = int_to_ptr.vmem [resolvable:$true] %s197
          %204 = sst [smem:[#allocation12]] 2048
          %s205 = scalar_lea.smem [#allocation12], 1
          %206 = sst [smem:[%s205]] 1024
          %s207 = scalar_lea.smem [#allocation12], 2
          %208 = sst [smem:[%s207]] 8
          %s209 = scalar_lea.smem [#allocation12], 3
          %210 = sst [smem:[%s209]] 128
          %s211 = scalar_lea.smem [#allocation12], 4
          %212 = sst [smem:[%s211]] 128
          %s213 = scalar_lea.smem [#allocation12], 5
          %214 = sst [smem:[%s213]] 8
          %216 = dma.general %s184, 3072, %s198, %s175, [#allocation11], [#allocation12], %s196, 0
        $region20: #{tpu_custom_call.1} parent=15 // pred_fallthru
          _
        // Predicated region
        $region21: #{tpu_custom_call.1} parent=15 // pred_check
          %p217 = pneg %p68
        $region22: #{tpu_custom_call.1} parent=15 // pred_check_branch
          %219 = sbr.rel (%p217) target = $region24
        $region23: #{tpu_custom_call.1} parent=15 // pred_region
          %s220 = sand.u32 %s22, 1
          %s221 = scalar_lea.sflag [#allocation6], %s220
          %s222 = sand.u32 %s58, 1
          %s223 = smul.addr %s222, 64
          %s224 = scalar_lea.vmem [#allocation5], %s223
          %s225 = smul.u32 8, %s22
          %s227 = ssub.s32 1024, 1024
          %228 = vsyncadd %s221, %s227
          %s229 = smul.addr %s225, 128
          %s230 = scalar_lea.hbm %s1, %s229
          %s231 = sshll.u32 %s224, 4
          %s232 = int_to_ptr.vmem [resolvable:$true] %s231
          %237 = dma.hbm_to_vmem [thread:$0]  %s230, 1024, %s232, %s221, 128, 128, 8
        $region24: #{tpu_custom_call.1} parent=15 // pred_fallthru
          _
        // Predicated region
        $region25: #{tpu_custom_call.1} parent=15 // pred_check
          %p238 = pneg %p94
        $region26: #{tpu_custom_call.1} parent=15 // pred_check_branch
          %240 = sbr.rel (%p238) target = $region28
        $region27: #{tpu_custom_call.1} parent=15 // pred_region
          %s241 = sand.u32 %s22, 1
          %s242 = scalar_lea.sflag [#allocation6], %s241
          %s243 = sand.u32 %s84, 1
          %s244 = smul.addr %s243, 96
          %s245 = scalar_lea.vmem [#allocation7], %s244
          %s247 = ssub.s32 1536, 1536
          %248 = vsyncadd %s242, %s247
          %s249 = smul.addr %s22, 12
          %s250 = smul.addr %s249, 128
          %s251 = scalar_lea.hbm %s2, %s250
          %s252 = sshll.u32 %s245, 4
          %s253 = int_to_ptr.vmem [resolvable:$true] %s252
          %258 = dma.hbm_to_vmem [thread:$0]  %s251, 1536, %s253, %s242, 128, 128, 8
        $region28: #{tpu_custom_call.1} parent=15 // pred_fallthru
          _
        // Predicated region
        $region29: #{tpu_custom_call.1} parent=15 // pred_check
          %p259 = pneg %p120
        $region30: #{tpu_custom_call.1} parent=15 // pred_check_branch
          %261 = sbr.rel (%p259) target = $region32
        $region31: #{tpu_custom_call.1} parent=15 // pred_region
          %s262 = sand.u32 %s110, 1
          %s263 = scalar_lea.sflag [#allocation9], %s262
          %s264 = sand.u32 %s110, 1
          %s265 = smul.addr %s264, 32
          %s266 = scalar_lea.vmem [#allocation8], %s265
          %s268 = ssub.s32 512, 512
          %269 = vsyncadd %s263, %s268
          %s270 = smul.addr %s22, 4
          %s271 = smul.addr %s270, 128
          %s272 = scalar_lea.hbm %s3, %s271
          %s273 = sshll.u32 %s266, 4
          %s274 = int_to_ptr.vmem [resolvable:$true] %s273
          %279 = dma.hbm_to_vmem [thread:$0]  %s272, 512, %s274, %s263, 128, 128, 8
        $region32: #{tpu_custom_call.1} parent=15 // pred_fallthru
          _
      $region16: #{tpu_custom_call.1} parent=5 // pred_fallthru
        _
      %p280 = scmp.le.s32.totalorder 1, %s22
      %p281 = scmp.lt.s32.totalorder %s22, 3
      %p282 = pnand %p280, %p281
      %p283 = pneg %p282
      // Predicated region
      $region33: #{tpu_custom_call.1} parent=5 // pred_check
        _
      $region34: #{tpu_custom_call.1} parent=5 // pred_check_branch
        %285 = sbr.rel (%p282) target = $region36
      $region35: #{tpu_custom_call.1} parent=5 // pred_region
        %s286 = ssub.s32 %s22, 1
        %s287 = sand.u32 %s35, 1
        %s288 = scalar_lea.sflag [#allocation3], %s287
        %s289 = sand.u32 %s35, 1
        %s290 = smul.addr %s289, 192
        %s291 = scalar_lea.vmem [#allocation2], %s290
        // Predicated region
        $region37: #{tpu_custom_call.1} parent=35 // pred_check
          %p292 = pneg %p48
        $region38: #{tpu_custom_call.1} parent=35 // pred_check_branch
          %294 = sbr.rel (%p292) target = $region40
        $region39: #{tpu_custom_call.1} parent=35 // pred_region
          %295 = dma.done %s288, 3072
        $region40: #{tpu_custom_call.1} parent=35 // pred_fallthru
          _
        %s296 = sand.u32 %s27, 1
        %s297 = scalar_lea.sflag [#allocation6], %s296
        %s298 = sand.u32 %s61, 1
        %s299 = smul.addr %s298, 64
        %s300 = scalar_lea.vmem [#allocation5], %s299
        // Predicated region
        $region41: #{tpu_custom_call.1} parent=35 // pred_check
          %p301 = pneg %p74
        $region42: #{tpu_custom_call.1} parent=35 // pred_check_branch
          %303 = sbr.rel (%p301) target = $region44
        $region43: #{tpu_custom_call.1} parent=35 // pred_region
          %304 = dma.done %s297, 1024
        $region44: #{tpu_custom_call.1} parent=35 // pred_fallthru
          _
        %s305 = sand.u32 %s27, 1
        %s306 = scalar_lea.sflag [#allocation6], %s305
        %s307 = sand.u32 %s87, 1
        %s308 = smul.addr %s307, 96
        %s309 = scalar_lea.vmem [#allocation7], %s308
        // Predicated region
        $region45: #{tpu_custom_call.1} parent=35 // pred_check
          %p310 = pneg %p100
        $region46: #{tpu_custom_call.1} parent=35 // pred_check_branch
          %312 = sbr.rel (%p310) target = $region48
        $region47: #{tpu_custom_call.1} parent=35 // pred_region
          %313 = dma.done %s306, 1536
        $region48: #{tpu_custom_call.1} parent=35 // pred_fallthru
          _
        %s314 = sand.u32 %s113, 1
        %s315 = scalar_lea.sflag [#allocation9], %s314
        %s316 = sand.u32 %s113, 1
        %s317 = smul.addr %s316, 32
        %s318 = scalar_lea.vmem [#allocation8], %s317
        // Predicated region
        $region49: #{tpu_custom_call.1} parent=35 // pred_check
          %p319 = pneg %p126
        $region50: #{tpu_custom_call.1} parent=35 // pred_check_branch
          %321 = sbr.rel (%p319) target = $region52
        $region51: #{tpu_custom_call.1} parent=35 // pred_region
          %322 = dma.done %s315, 512
        $region52: #{tpu_custom_call.1} parent=35 // pred_fallthru
          _
        %s323 = sand.u32 %s35, 1
        %s324 = scalar_lea.sflag [#allocation3], %s323
        %s325 = sand.u32 %s35, 1
        %s326 = smul.addr %s325, 192
        %s327 = scalar_lea.vmem [#allocation2], %s326
        %p328 = pneg %p48
        %p329 = pneg %p45
        %s330 = sand.u32 %s27, 1
        %s331 = scalar_lea.sflag [#allocation6], %s330
        %s332 = sand.u32 %s61, 1
        %s333 = smul.addr %s332, 64
        %s334 = scalar_lea.vmem [#allocation5], %s333
        %p335 = pneg %p74
        %p336 = pneg %p71
        %s337 = sand.u32 %s27, 1
        %s338 = scalar_lea.sflag [#allocation6], %s337
        %s339 = sand.u32 %s87, 1
        %s340 = smul.addr %s339, 96
        %s341 = scalar_lea.vmem [#allocation7], %s340
        %p342 = pneg %p100
        %p343 = pneg %p97
        %s344 = sand.u32 %s113, 1
        %s345 = scalar_lea.sflag [#allocation9], %s344
        %s346 = sand.u32 %s113, 1
        %s347 = smul.addr %s346, 32
        %s348 = scalar_lea.vmem [#allocation8], %s347
        %p349 = pneg %p126
        %p350 = pneg %p123
        %p351 = pneg %p152
        %p352 = pneg %p149
        %s353 = sand.u32 %s139, 1
        %s354 = scalar_lea.sflag [#allocation4], %s353
        %s355 = sand.u32 %s139, 1
        %s356 = smul.addr %s355, 256
        %s357 = scalar_lea.vmem [#allocation10], %s356
        %s358 = smul.u32 8, %s27
        %s359 = smul.u32 8, %s27
        %s360 = smul.u32 8, %s27
        %v361 = vld [vmem:[%s291] sm:$0xff]
        %v362 = vld [vmem:[%s291 + $0x8] sm:$0xff]
        %v363 = vld [vmem:[%s291 + $0x10] sm:$0xff]
        %v364 = vld [vmem:[%s291 + $0x18] sm:$0xff]
        %v365 = vld [vmem:[%s291 + $0x20] sm:$0xff]
        %v366 = vld [vmem:[%s291 + $0x28] sm:$0xff]
        %v367 = vld [vmem:[%s291 + $0x30] sm:$0xff]
        %v368 = vld [vmem:[%s291 + $0x38] sm:$0xff]
        %v369 = vld [vmem:[%s309] sm:$0xff]
        %v370 = vld [vmem:[%s309 + $0x8] sm:$0xff]
        %v371 = vld [vmem:[%s309 + $0x10] sm:$0xff]
        %v372 = vld [vmem:[%s309 + $0x18] sm:$0xff]
        %s373 = scalar_lea.vmem %s291, 64 [#allocation2]
        %v374 = vld [vmem:[%s373] sm:$0xff]
        %v375 = vld [vmem:[%s373 + $0x8] sm:$0xff]
        %v376 = vld [vmem:[%s373 + $0x10] sm:$0xff]
        %v377 = vld [vmem:[%s373 + $0x18] sm:$0xff]
        %v378 = vld [vmem:[%s373 + $0x20] sm:$0xff]
        %v379 = vld [vmem:[%s373 + $0x28] sm:$0xff]
        %v380 = vld [vmem:[%s373 + $0x30] sm:$0xff]
        %v381 = vld [vmem:[%s373 + $0x38] sm:$0xff]
        %s382 = scalar_lea.vmem %s309, 32 [#allocation7]
        %v383 = vld [vmem:[%s382] sm:$0xff]
        %v384 = vld [vmem:[%s382 + $0x8] sm:$0xff]
        %v385 = vld [vmem:[%s382 + $0x10] sm:$0xff]
        %v386 = vld [vmem:[%s382 + $0x18] sm:$0xff]
        %s387 = scalar_lea.vmem %s291, 128 [#allocation2]
        %v388 = vld [vmem:[%s387] sm:$0xff]
        %v389 = vld [vmem:[%s387 + $0x8] sm:$0xff]
        %v390 = vld [vmem:[%s387 + $0x10] sm:$0xff]
        %v391 = vld [vmem:[%s387 + $0x18] sm:$0xff]
        %v392 = vld [vmem:[%s387 + $0x20] sm:$0xff]
        %v393 = vld [vmem:[%s387 + $0x28] sm:$0xff]
        %v394 = vld [vmem:[%s387 + $0x30] sm:$0xff]
        %v395 = vld [vmem:[%s387 + $0x38] sm:$0xff]
        %s396 = scalar_lea.vmem %s309, 64 [#allocation7]
        %v397 = vld [vmem:[%s396] sm:$0xff]
        %v398 = vld [vmem:[%s396 + $0x8] sm:$0xff]
        %v399 = vld [vmem:[%s396 + $0x10] sm:$0xff]
        %v400 = vld [vmem:[%s396 + $0x18] sm:$0xff]
        %v401 = vld [vmem:[%s300] sm:$0xff]
        %v402 = vld [vmem:[%s300 + $0x8] sm:$0xff]
        %v403 = vld [vmem:[%s300 + $0x10] sm:$0xff]
        %v404 = vld [vmem:[%s300 + $0x18] sm:$0xff]
        %v405 = vld [vmem:[%s300 + $0x20] sm:$0xff]
        %v406 = vld [vmem:[%s300 + $0x28] sm:$0xff]
        %v407 = vld [vmem:[%s300 + $0x30] sm:$0xff]
        %v408 = vld [vmem:[%s300 + $0x38] sm:$0xff]
        %v409 = vld [vmem:[%s318] sm:$0xff]
        %v410 = vld [vmem:[%s318 + $0x8] sm:$0xff]
        %v411 = vld [vmem:[%s318 + $0x10] sm:$0xff]
        %v412 = vld [vmem:[%s318 + $0x18] sm:$0xff]
        %v413 = vlog2.pop %v410
        %v414 = vmul.f32 %v413, 0.6931472
        %v415 = vlog2.pop %v401
        %v416 = vmul.f32 %v415, 0.6931472
        %v417 = vlog2.pop %v402
        %v418 = vmul.f32 %v417, 0.6931472
        %v419 = vlog2.pop %v403
        %v420 = vmul.f32 %v419, 0.6931472
        %v421 = vlog2.pop %v404
        %v422 = vmul.f32 %v421, 0.6931472
        %v423 = vlog2.pop %v405
        %v424 = vmul.f32 %v423, 0.6931472
        %v425 = vlog2.pop %v406
        %v426 = vmul.f32 %v425, 0.6931472
        %v427 = vlog2.pop %v407
        %v428 = vmul.f32 %v427, 0.6931472
        %v429 = vlog2.pop %v408
        %v430 = vmul.f32 %v429, 0.6931472
        %v431 = vlog2.pop %v411
        %v432 = vmul.f32 %v431, 0.6931472
        %v433 = vmul.f32 %v414, 0.71
        %v434 = vmul.f32 %v416, 0.71
        %v435 = vmul.f32 %v418, 0.71
        %v436 = vmul.f32 %v420, 0.71
        %v437 = vmul.f32 %v422, 0.71
        %v438 = vmul.f32 %v424, 0.71
        %v439 = vmul.f32 %v426, 0.71
        %v440 = vmul.f32 %v428, 0.71
        %v441 = vmul.f32 %v430, 0.71
        %v442 = vmul.f32 %v432, 0.71
        %v443 = vmul.f32 %v433, 1.442695
        %v444 = vpow.pop %v443
        %v445 = vmul.f32 %v434, 1.442695
        %v446 = vpow.pop %v445
        %v447 = vmul.f32 %v435, 1.442695
        %v448 = vpow.pop %v447
        %v449 = vmul.f32 %v436, 1.442695
        %v450 = vpow.pop %v449
        %v451 = vmul.f32 %v437, 1.442695
        %v452 = vpow.pop %v451
        %v453 = vmul.f32 %v438, 1.442695
        %v454 = vpow.pop %v453
        %v455 = vmul.f32 %v439, 1.442695
        %v456 = vpow.pop %v455
        %v457 = vmul.f32 %v440, 1.442695
        %v458 = vpow.pop %v457
        %v459 = vmul.f32 %v441, 1.442695
        %v460 = vpow.pop %v459
        %v461 = vmul.f32 %v442, 1.442695
        %v462 = vpow.pop %v461
        %v463 = vmul.f32 %v444, 1.8e-05
        %v464 = vmul.f32 %v446, 1.8e-05
        %v465 = vmul.f32 %v448, 1.8e-05
        %v466 = vmul.f32 %v450, 1.8e-05
        %v467 = vmul.f32 %v452, 1.8e-05
        %v468 = vmul.f32 %v454, 1.8e-05
        %v469 = vmul.f32 %v456, 1.8e-05
        %v470 = vmul.f32 %v458, 1.8e-05
        %v471 = vmul.f32 %v460, 1.8e-05
        %v472 = vmul.f32 %v462, 1.8e-05
        %v473 = vmul.f32 %v444, 0.026
        %v474 = vmul.f32 %v446, 0.026
        %v475 = vmul.f32 %v448, 0.026
        %v476 = vmul.f32 %v450, 0.026
        %v477 = vmul.f32 %v452, 0.026
        %v478 = vmul.f32 %v454, 0.026
        %v479 = vmul.f32 %v456, 0.026
        %v480 = vmul.f32 %v458, 0.026
        %v481 = vmul.f32 %v460, 0.026
        %v482 = vmul.f32 %v462, 0.026
        %v483 = vsub.f32 %v361, %v369
        %v484 = vsub.f32 %v362, %v370
        %v485 = vsub.f32 %v363, %v361
        %v486 = vsub.f32 %v364, %v362
        %v487 = vsub.f32 %v365, %v363
        %v488 = vsub.f32 %v366, %v364
        %v489 = vsub.f32 %v367, %v365
        %v490 = vsub.f32 %v368, %v366
        %v491 = vsub.f32 %v371, %v367
        %v492 = vsub.f32 %v372, %v368
        %v493 = vmul.f32 %v483, 8.0
        %v494 = vmul.f32 %v484, 8.0
        %v495 = vmul.f32 %v485, 8.0
        %v496 = vmul.f32 %v486, 8.0
        %v497 = vmul.f32 %v487, 8.0
        %v498 = vmul.f32 %v488, 8.0
        %v499 = vmul.f32 %v489, 8.0
        %v500 = vmul.f32 %v490, 8.0
        %v501 = vmul.f32 %v491, 8.0
        %v502 = vmul.f32 %v492, 8.0
        %v503 = vsub.f32 %v374, %v383
        %v504 = vsub.f32 %v375, %v384
        %v505 = vsub.f32 %v376, %v374
        %v506 = vsub.f32 %v377, %v375
        %v507 = vsub.f32 %v378, %v376
        %v508 = vsub.f32 %v379, %v377
        %v509 = vsub.f32 %v380, %v378
        %v510 = vsub.f32 %v381, %v379
        %v511 = vsub.f32 %v385, %v380
        %v512 = vsub.f32 %v386, %v381
        %v513 = vmul.f32 %v503, 8.0
        %v514 = vmul.f32 %v504, 8.0
        %v515 = vmul.f32 %v505, 8.0
        %v516 = vmul.f32 %v506, 8.0
        %v517 = vmul.f32 %v507, 8.0
        %v518 = vmul.f32 %v508, 8.0
        %v519 = vmul.f32 %v509, 8.0
        %v520 = vmul.f32 %v510, 8.0
        %v521 = vmul.f32 %v511, 8.0
        %v522 = vmul.f32 %v512, 8.0
        %v523 = vsub.f32 %v388, %v397
        %v524 = vsub.f32 %v389, %v398
        %v525 = vsub.f32 %v390, %v388
        %v526 = vsub.f32 %v391, %v389
        %v527 = vsub.f32 %v392, %v390
        %v528 = vsub.f32 %v393, %v391
        %v529 = vsub.f32 %v394, %v392
        %v530 = vsub.f32 %v395, %v393
        %v531 = vsub.f32 %v399, %v394
        %v532 = vsub.f32 %v400, %v395
        %v533 = vmul.f32 %v523, 8.0
        %v534 = vmul.f32 %v524, 8.0
        %v535 = vmul.f32 %v525, 8.0
        %v536 = vmul.f32 %v526, 8.0
        %v537 = vmul.f32 %v527, 8.0
        %v538 = vmul.f32 %v528, 8.0
        %v539 = vmul.f32 %v529, 8.0
        %v540 = vmul.f32 %v530, 8.0
        %v541 = vmul.f32 %v531, 8.0
        %v542 = vmul.f32 %v532, 8.0
        %v543 = vsub.f32 %v401, %v409
        %v544 = vsub.f32 %v402, %v410
        %v545 = vsub.f32 %v403, %v401
        %v546 = vsub.f32 %v404, %v402
        %v547 = vsub.f32 %v405, %v403
        %v548 = vsub.f32 %v406, %v404
        %v549 = vsub.f32 %v407, %v405
        %v550 = vsub.f32 %v408, %v406
        %v551 = vsub.f32 %v411, %v407
        %v552 = vsub.f32 %v412, %v408
        %v553 = vmul.f32 %v543, 8.0
        %v554 = vmul.f32 %v544, 8.0
        %v555 = vmul.f32 %v545, 8.0
        %v556 = vmul.f32 %v546, 8.0
        %v557 = vmul.f32 %v547, 8.0
        %v558 = vmul.f32 %v548, 8.0
        %v559 = vmul.f32 %v549, 8.0
        %v560 = vmul.f32 %v550, 8.0
        %v561 = vmul.f32 %v551, 8.0
        %v562 = vmul.f32 %v552, 8.0
        %v563 = vrot.slane %v370, 1
        %v564 = vrot.slane %v361, 1
        %v565 = vrot.slane %v362, 1
        %v566 = vrot.slane %v363, 1
        %v567 = vrot.slane %v364, 1
        %v568 = vrot.slane %v365, 1
        %v569 = vrot.slane %v366, 1
        %v570 = vrot.slane %v367, 1
        %v571 = vrot.slane %v368, 1
        %v572 = vrot.slane %v371, 1
        %v573 = vrot.slane %v370, 7
        %v574 = vrot.slane %v361, 7
        %v575 = vrot.slane %v362, 7
        %v576 = vrot.slane %v363, 7
        %v577 = vrot.slane %v364, 7
        %v578 = vrot.slane %v365, 7
        %v579 = vrot.slane %v366, 7
        %v580 = vrot.slane %v367, 7
        %v581 = vrot.slane %v368, 7
        %v582 = vrot.slane %v371, 7
        %v583 = vsub.f32 %v563, %v573
        %v584 = vsub.f32 %v564, %v574
        %v585 = vsub.f32 %v565, %v575
        %v586 = vsub.f32 %v566, %v576
        %v587 = vsub.f32 %v567, %v577
        %v588 = vsub.f32 %v568, %v578
        %v589 = vsub.f32 %v569, %v579
        %v590 = vsub.f32 %v570, %v580
        %v591 = vsub.f32 %v571, %v581
        %v592 = vsub.f32 %v572, %v582
        %v593 = vmul.f32 %v583, 4.0
        %v594 = vmul.f32 %v584, 4.0
        %v595 = vmul.f32 %v585, 4.0
        %v596 = vmul.f32 %v586, 4.0
        %v597 = vmul.f32 %v587, 4.0
        %v598 = vmul.f32 %v588, 4.0
        %v599 = vmul.f32 %v589, 4.0
        %v600 = vmul.f32 %v590, 4.0
        %v601 = vmul.f32 %v591, 4.0
        %v602 = vmul.f32 %v592, 4.0
        %603 = vrot.lane.b32.xlu0 %v370, 127
        %v604 = vpop.permute.xlu0 %603
        %605 = vrot.lane.b32.xlu0 %v361, 127
        %v606 = vpop.permute.xlu0 %605
        %607 = vrot.lane.b32.xlu0 %v362, 127
        %v608 = vpop.permute.xlu0 %607
        %609 = vrot.lane.b32.xlu0 %v363, 127
        %v610 = vpop.permute.xlu0 %609
        %611 = vrot.lane.b32.xlu0 %v364, 127
        %v612 = vpop.permute.xlu0 %611
        %613 = vrot.lane.b32.xlu0 %v365, 127
        %v614 = vpop.permute.xlu0 %613
        %615 = vrot.lane.b32.xlu0 %v366, 127
        %v616 = vpop.permute.xlu0 %615
        %617 = vrot.lane.b32.xlu0 %v367, 127
        %v618 = vpop.permute.xlu0 %617
        %619 = vrot.lane.b32.xlu0 %v368, 127
        %v620 = vpop.permute.xlu0 %619
        %621 = vrot.lane.b32.xlu0 %v371, 127
        %v622 = vpop.permute.xlu0 %621
        %623 = vrot.lane.b32.xlu0 %v370, 1
        %v624 = vpop.permute.xlu0 %623
        %625 = vrot.lane.b32.xlu0 %v361, 1
        %v626 = vpop.permute.xlu0 %625
        %627 = vrot.lane.b32.xlu0 %v362, 1
        %v628 = vpop.permute.xlu0 %627
        %629 = vrot.lane.b32.xlu0 %v363, 1
        %v630 = vpop.permute.xlu0 %629
        %631 = vrot.lane.b32.xlu0 %v364, 1
        %v632 = vpop.permute.xlu0 %631
        %633 = vrot.lane.b32.xlu0 %v365, 1
        %v634 = vpop.permute.xlu0 %633
        %635 = vrot.lane.b32.xlu0 %v366, 1
        %v636 = vpop.permute.xlu0 %635
        %637 = vrot.lane.b32.xlu0 %v367, 1
        %v638 = vpop.permute.xlu0 %637
        %639 = vrot.lane.b32.xlu0 %v368, 1
        %v640 = vpop.permute.xlu0 %639
        %641 = vrot.lane.b32.xlu0 %v371, 1
        %v642 = vpop.permute.xlu0 %641
        %v643 = vsub.f32 %v604, %v624
        %v644 = vsub.f32 %v606, %v626
        %v645 = vsub.f32 %v608, %v628
        %v646 = vsub.f32 %v610, %v630
        %v647 = vsub.f32 %v612, %v632
        %v648 = vsub.f32 %v614, %v634
        %v649 = vsub.f32 %v616, %v636
        %v650 = vsub.f32 %v618, %v638
        %v651 = vsub.f32 %v620, %v640
        %v652 = vsub.f32 %v622, %v642
        %v653 = vmul.f32 %v643, 64.0
        %v654 = vmul.f32 %v644, 64.0
        %v655 = vmul.f32 %v645, 64.0
        %v656 = vmul.f32 %v646, 64.0
        %v657 = vmul.f32 %v647, 64.0
        %v658 = vmul.f32 %v648, 64.0
        %v659 = vmul.f32 %v649, 64.0
        %v660 = vmul.f32 %v650, 64.0
        %v661 = vmul.f32 %v651, 64.0
        %v662 = vmul.f32 %v652, 64.0
        %v663 = vrot.slane %v384, 1
        %v664 = vrot.slane %v374, 1
        %v665 = vrot.slane %v375, 1
        %v666 = vrot.slane %v376, 1
        %v667 = vrot.slane %v377, 1
        %v668 = vrot.slane %v378, 1
        %v669 = vrot.slane %v379, 1
        %v670 = vrot.slane %v380, 1
        %v671 = vrot.slane %v381, 1
        %v672 = vrot.slane %v385, 1
        %v673 = vrot.slane %v384, 7
        %v674 = vrot.slane %v374, 7
        %v675 = vrot.slane %v375, 7
        %v676 = vrot.slane %v376, 7
        %v677 = vrot.slane %v377, 7
        %v678 = vrot.slane %v378, 7
        %v679 = vrot.slane %v379, 7
        %v680 = vrot.slane %v380, 7
        %v681 = vrot.slane %v381, 7
        %v682 = vrot.slane %v385, 7
        %v683 = vsub.f32 %v663, %v673
        %v684 = vsub.f32 %v664, %v674
        %v685 = vsub.f32 %v665, %v675
        %v686 = vsub.f32 %v666, %v676
        %v687 = vsub.f32 %v667, %v677
        %v688 = vsub.f32 %v668, %v678
        %v689 = vsub.f32 %v669, %v679
        %v690 = vsub.f32 %v670, %v680
        %v691 = vsub.f32 %v671, %v681
        %v692 = vsub.f32 %v672, %v682
        %v693 = vmul.f32 %v683, 4.0
        %v694 = vmul.f32 %v684, 4.0
        %v695 = vmul.f32 %v685, 4.0
        %v696 = vmul.f32 %v686, 4.0
        %v697 = vmul.f32 %v687, 4.0
        %v698 = vmul.f32 %v688, 4.0
        %v699 = vmul.f32 %v689, 4.0
        %v700 = vmul.f32 %v690, 4.0
        %v701 = vmul.f32 %v691, 4.0
        %v702 = vmul.f32 %v692, 4.0
        %703 = vrot.lane.b32.xlu0 %v398, 127
        %v704 = vpop.permute.xlu0 %703
        %705 = vrot.lane.b32.xlu0 %v388, 127
        %v706 = vpop.permute.xlu0 %705
        %707 = vrot.lane.b32.xlu0 %v389, 127
        %v708 = vpop.permute.xlu0 %707
        %709 = vrot.lane.b32.xlu0 %v390, 127
        %v710 = vpop.permute.xlu0 %709
        %711 = vrot.lane.b32.xlu0 %v391, 127
        %v712 = vpop.permute.xlu0 %711
        %713 = vrot.lane.b32.xlu0 %v392, 127
        %v714 = vpop.permute.xlu0 %713
        %715 = vrot.lane.b32.xlu0 %v393, 127
        %v716 = vpop.permute.xlu0 %715
        %717 = vrot.lane.b32.xlu0 %v394, 127
        %v718 = vpop.permute.xlu0 %717
        %719 = vrot.lane.b32.xlu0 %v395, 127
        %v720 = vpop.permute.xlu0 %719
        %721 = vrot.lane.b32.xlu0 %v399, 127
        %v722 = vpop.permute.xlu0 %721
        %723 = vrot.lane.b32.xlu0 %v398, 1
        %v724 = vpop.permute.xlu0 %723
        %725 = vrot.lane.b32.xlu0 %v388, 1
        %v726 = vpop.permute.xlu0 %725
        %727 = vrot.lane.b32.xlu0 %v389, 1
        %v728 = vpop.permute.xlu0 %727
        %729 = vrot.lane.b32.xlu0 %v390, 1
        %v730 = vpop.permute.xlu0 %729
        %731 = vrot.lane.b32.xlu0 %v391, 1
        %v732 = vpop.permute.xlu0 %731
        %733 = vrot.lane.b32.xlu0 %v392, 1
        %v734 = vpop.permute.xlu0 %733
        %735 = vrot.lane.b32.xlu0 %v393, 1
        %v736 = vpop.permute.xlu0 %735
        %737 = vrot.lane.b32.xlu0 %v394, 1
        %v738 = vpop.permute.xlu0 %737
        %739 = vrot.lane.b32.xlu0 %v395, 1
        %v740 = vpop.permute.xlu0 %739
        %741 = vrot.lane.b32.xlu0 %v399, 1
        %v742 = vpop.permute.xlu0 %741
        %v743 = vsub.f32 %v704, %v724
        %v744 = vsub.f32 %v706, %v726
        %v745 = vsub.f32 %v708, %v728
        %v746 = vsub.f32 %v710, %v730
        %v747 = vsub.f32 %v712, %v732
        %v748 = vsub.f32 %v714, %v734
        %v749 = vsub.f32 %v716, %v736
        %v750 = vsub.f32 %v718, %v738
        %v751 = vsub.f32 %v720, %v740
        %v752 = vsub.f32 %v722, %v742
        %v753 = vmul.f32 %v743, 64.0
        %v754 = vmul.f32 %v744, 64.0
        %v755 = vmul.f32 %v745, 64.0
        %v756 = vmul.f32 %v746, 64.0
        %v757 = vmul.f32 %v747, 64.0
        %v758 = vmul.f32 %v748, 64.0
        %v759 = vmul.f32 %v749, 64.0
        %v760 = vmul.f32 %v750, 64.0
        %v761 = vmul.f32 %v751, 64.0
        %v762 = vmul.f32 %v752, 64.0
        %v763 = vadd.f32 %v493, %v693
        %v764 = vadd.f32 %v494, %v694
        %v765 = vadd.f32 %v495, %v695
        %v766 = vadd.f32 %v496, %v696
        %v767 = vadd.f32 %v497, %v697
        %v768 = vadd.f32 %v498, %v698
        %v769 = vadd.f32 %v499, %v699
        %v770 = vadd.f32 %v500, %v700
        %v771 = vadd.f32 %v501, %v701
        %v772 = vadd.f32 %v502, %v702
        %v773 = vadd.f32 %v763, %v753
        %v774 = vadd.f32 %v764, %v754
        %v775 = vadd.f32 %v765, %v755
        %v776 = vadd.f32 %v766, %v756
        %v777 = vadd.f32 %v767, %v757
        %v778 = vadd.f32 %v768, %v758
        %v779 = vadd.f32 %v769, %v759
        %v780 = vadd.f32 %v770, %v760
        %v781 = vadd.f32 %v771, %v761
        %v782 = vadd.f32 %v772, %v762
        %v783 = vrot.slane %v388, 1
        %v784 = vrot.slane %v389, 1
        %v785 = vrot.slane %v390, 1
        %v786 = vrot.slane %v391, 1
        %v787 = vrot.slane %v392, 1
        %v788 = vrot.slane %v393, 1
        %v789 = vrot.slane %v394, 1
        %v790 = vrot.slane %v395, 1
        %v791 = vrot.slane %v388, 7
        %v792 = vrot.slane %v389, 7
        %v793 = vrot.slane %v390, 7
        %v794 = vrot.slane %v391, 7
        %v795 = vrot.slane %v392, 7
        %v796 = vrot.slane %v393, 7
        %v797 = vrot.slane %v394, 7
        %v798 = vrot.slane %v395, 7
        %v799 = vsub.f32 %v783, %v791
        %v800 = vsub.f32 %v784, %v792
        %v801 = vsub.f32 %v785, %v793
        %v802 = vsub.f32 %v786, %v794
        %v803 = vsub.f32 %v787, %v795
        %v804 = vsub.f32 %v788, %v796
        %v805 = vsub.f32 %v789, %v797
        %v806 = vsub.f32 %v790, %v798
        %v807 = vmul.f32 %v799, 4.0
        %v808 = vmul.f32 %v800, 4.0
        %v809 = vmul.f32 %v801, 4.0
        %v810 = vmul.f32 %v802, 4.0
        %v811 = vmul.f32 %v803, 4.0
        %v812 = vmul.f32 %v804, 4.0
        %v813 = vmul.f32 %v805, 4.0
        %v814 = vmul.f32 %v806, 4.0
        %815 = vrot.lane.b32.xlu0 %v374, 127
        %v816 = vpop.permute.xlu0 %815
        %817 = vrot.lane.b32.xlu0 %v375, 127
        %v818 = vpop.permute.xlu0 %817
        %819 = vrot.lane.b32.xlu0 %v376, 127
        %v820 = vpop.permute.xlu0 %819
        %821 = vrot.lane.b32.xlu0 %v377, 127
        %v822 = vpop.permute.xlu0 %821
        %823 = vrot.lane.b32.xlu0 %v378, 127
        %v824 = vpop.permute.xlu0 %823
        %825 = vrot.lane.b32.xlu0 %v379, 127
        %v826 = vpop.permute.xlu0 %825
        %827 = vrot.lane.b32.xlu0 %v380, 127
        %v828 = vpop.permute.xlu0 %827
        %829 = vrot.lane.b32.xlu0 %v381, 127
        %v830 = vpop.permute.xlu0 %829
        %831 = vrot.lane.b32.xlu0 %v374, 1
        %v832 = vpop.permute.xlu0 %831
        %833 = vrot.lane.b32.xlu0 %v375, 1
        %v834 = vpop.permute.xlu0 %833
        %835 = vrot.lane.b32.xlu0 %v376, 1
        %v836 = vpop.permute.xlu0 %835
        %837 = vrot.lane.b32.xlu0 %v377, 1
        %v838 = vpop.permute.xlu0 %837
        %839 = vrot.lane.b32.xlu0 %v378, 1
        %v840 = vpop.permute.xlu0 %839
        %841 = vrot.lane.b32.xlu0 %v379, 1
        %v842 = vpop.permute.xlu0 %841
        %843 = vrot.lane.b32.xlu0 %v380, 1
        %v844 = vpop.permute.xlu0 %843
        %845 = vrot.lane.b32.xlu0 %v381, 1
        %v846 = vpop.permute.xlu0 %845
        %v847 = vsub.f32 %v816, %v832
        %v848 = vsub.f32 %v818, %v834
        %v849 = vsub.f32 %v820, %v836
        %v850 = vsub.f32 %v822, %v838
        %v851 = vsub.f32 %v824, %v840
        %v852 = vsub.f32 %v826, %v842
        %v853 = vsub.f32 %v828, %v844
        %v854 = vsub.f32 %v830, %v846
        %v855 = vmul.f32 %v847, 64.0
        %v856 = vmul.f32 %v848, 64.0
        %v857 = vmul.f32 %v849, 64.0
        %v858 = vmul.f32 %v850, 64.0
        %v859 = vmul.f32 %v851, 64.0
        %v860 = vmul.f32 %v852, 64.0
        %v861 = vmul.f32 %v853, 64.0
        %v862 = vmul.f32 %v854, 64.0
        %v863 = vmul.f32 %v463, %v773
        %v864 = vmul.f32 %v464, %v774
        %v865 = vmul.f32 %v465, %v775
        %v866 = vmul.f32 %v466, %v776
        %v867 = vmul.f32 %v467, %v777
        %v868 = vmul.f32 %v468, %v778
        %v869 = vmul.f32 %v469, %v779
        %v870 = vmul.f32 %v470, %v780
        %v871 = vmul.f32 %v471, %v781
        %v872 = vmul.f32 %v472, %v782
        %v873 = vmul.f32 %v863, 0.6666667
        %v874 = vmul.f32 %v864, 0.6666667
        %v875 = vmul.f32 %v865, 0.6666667
        %v876 = vmul.f32 %v866, 0.6666667
        %v877 = vmul.f32 %v867, 0.6666667
        %v878 = vmul.f32 %v868, 0.6666667
        %v879 = vmul.f32 %v869, 0.6666667
        %v880 = vmul.f32 %v870, 0.6666667
        %v881 = vmul.f32 %v871, 0.6666667
        %v882 = vmul.f32 %v872, 0.6666667
        %v883 = vadd.f32 %v463, %v463
        %v884 = vadd.f32 %v464, %v464
        %v885 = vadd.f32 %v465, %v465
        %v886 = vadd.f32 %v466, %v466
        %v887 = vadd.f32 %v467, %v467
        %v888 = vadd.f32 %v468, %v468
        %v889 = vadd.f32 %v469, %v469
        %v890 = vadd.f32 %v470, %v470
        %v891 = vadd.f32 %v471, %v471
        %v892 = vadd.f32 %v472, %v472
        %v893 = vmul.f32 %v883, %v493
        %v894 = vmul.f32 %v884, %v494
        %v895 = vmul.f32 %v885, %v495
        %v896 = vmul.f32 %v886, %v496
        %v897 = vmul.f32 %v887, %v497
        %v898 = vmul.f32 %v888, %v498
        %v899 = vmul.f32 %v889, %v499
        %v900 = vmul.f32 %v890, %v500
        %v901 = vmul.f32 %v891, %v501
        %v902 = vmul.f32 %v892, %v502
        %v903 = vsub.f32 %v893, %v873
        %v904 = vsub.f32 %v894, %v874
        %v905 = vsub.f32 %v895, %v875
        %v906 = vsub.f32 %v896, %v876
        %v907 = vsub.f32 %v897, %v877
        %v908 = vsub.f32 %v898, %v878
        %v909 = vsub.f32 %v899, %v879
        %v910 = vsub.f32 %v900, %v880
        %v911 = vsub.f32 %v901, %v881
        %v912 = vsub.f32 %v902, %v882
        %v913 = vadd.f32 %v513, %v593
        %v914 = vadd.f32 %v514, %v594
        %v915 = vadd.f32 %v515, %v595
        %v916 = vadd.f32 %v516, %v596
        %v917 = vadd.f32 %v517, %v597
        %v918 = vadd.f32 %v518, %v598
        %v919 = vadd.f32 %v519, %v599
        %v920 = vadd.f32 %v520, %v600
        %v921 = vadd.f32 %v521, %v601
        %v922 = vadd.f32 %v522, %v602
        %v923 = vmul.f32 %v463, %v913
        %v924 = vmul.f32 %v464, %v914
        %v925 = vmul.f32 %v465, %v915
        %v926 = vmul.f32 %v466, %v916
        %v927 = vmul.f32 %v467, %v917
        %v928 = vmul.f32 %v468, %v918
        %v929 = vmul.f32 %v469, %v919
        %v930 = vmul.f32 %v470, %v920
        %v931 = vmul.f32 %v471, %v921
        %v932 = vmul.f32 %v472, %v922
        %v933 = vadd.f32 %v533, %v653
        %v934 = vadd.f32 %v534, %v654
        %v935 = vadd.f32 %v535, %v655
        %v936 = vadd.f32 %v536, %v656
        %v937 = vadd.f32 %v537, %v657
        %v938 = vadd.f32 %v538, %v658
        %v939 = vadd.f32 %v539, %v659
        %v940 = vadd.f32 %v540, %v660
        %v941 = vadd.f32 %v541, %v661
        %v942 = vadd.f32 %v542, %v662
        %v943 = vmul.f32 %v463, %v933
        %v944 = vmul.f32 %v464, %v934
        %v945 = vmul.f32 %v465, %v935
        %v946 = vmul.f32 %v466, %v936
        %v947 = vmul.f32 %v467, %v937
        %v948 = vmul.f32 %v468, %v938
        %v949 = vmul.f32 %v469, %v939
        %v950 = vmul.f32 %v470, %v940
        %v951 = vmul.f32 %v471, %v941
        %v952 = vmul.f32 %v472, %v942
        %v953 = vmul.f32 %v884, %v694
        %v954 = vmul.f32 %v885, %v695
        %v955 = vmul.f32 %v886, %v696
        %v956 = vmul.f32 %v887, %v697
        %v957 = vmul.f32 %v888, %v698
        %v958 = vmul.f32 %v889, %v699
        %v959 = vmul.f32 %v890, %v700
        %v960 = vmul.f32 %v891, %v701
        %v961 = vsub.f32 %v953, %v874
        %v962 = vsub.f32 %v954, %v875
        %v963 = vsub.f32 %v955, %v876
        %v964 = vsub.f32 %v956, %v877
        %v965 = vsub.f32 %v957, %v878
        %v966 = vsub.f32 %v958, %v879
        %v967 = vsub.f32 %v959, %v880
        %v968 = vsub.f32 %v960, %v881
        %v969 = vmul.f32 %v884, %v754
        %v970 = vmul.f32 %v885, %v755
        %v971 = vmul.f32 %v886, %v756
        %v972 = vmul.f32 %v887, %v757
        %v973 = vmul.f32 %v888, %v758
        %v974 = vmul.f32 %v889, %v759
        %v975 = vmul.f32 %v890, %v760
        %v976 = vmul.f32 %v891, %v761
        %v977 = vsub.f32 %v969, %v874
        %v978 = vsub.f32 %v970, %v875
        %v979 = vsub.f32 %v971, %v876
        %v980 = vsub.f32 %v972, %v877
        %v981 = vsub.f32 %v973, %v878
        %v982 = vsub.f32 %v974, %v879
        %v983 = vsub.f32 %v975, %v880
        %v984 = vsub.f32 %v976, %v881
        %v985 = vadd.f32 %v807, %v855
        %v986 = vadd.f32 %v808, %v856
        %v987 = vadd.f32 %v809, %v857
        %v988 = vadd.f32 %v810, %v858
        %v989 = vadd.f32 %v811, %v859
        %v990 = vadd.f32 %v812, %v860
        %v991 = vadd.f32 %v813, %v861
        %v992 = vadd.f32 %v814, %v862
        %v993 = vmul.f32 %v464, %v985
        %v994 = vmul.f32 %v465, %v986
        %v995 = vmul.f32 %v466, %v987
        %v996 = vmul.f32 %v467, %v988
        %v997 = vmul.f32 %v468, %v989
        %v998 = vmul.f32 %v469, %v990
        %v999 = vmul.f32 %v470, %v991
        %v1000 = vmul.f32 %v471, %v992
        %v1001 = vsub.f32 %v905, %v903
        %v1002 = vsub.f32 %v906, %v904
        %v1003 = vsub.f32 %v907, %v905
        %v1004 = vsub.f32 %v908, %v906
        %v1005 = vsub.f32 %v909, %v907
        %v1006 = vsub.f32 %v910, %v908
        %v1007 = vsub.f32 %v911, %v909
        %v1008 = vsub.f32 %v912, %v910
        %v1009 = vmul.f32 %v1001, 8.0
        %v1010 = vmul.f32 %v1002, 8.0
        %v1011 = vmul.f32 %v1003, 8.0
        %v1012 = vmul.f32 %v1004, 8.0
        %v1013 = vmul.f32 %v1005, 8.0
        %v1014 = vmul.f32 %v1006, 8.0
        %v1015 = vmul.f32 %v1007, 8.0
        %v1016 = vmul.f32 %v1008, 8.0
        %v1017 = vrot.slane %v924, 1
        %v1018 = vrot.slane %v925, 1
        %v1019 = vrot.slane %v926, 1
        %v1020 = vrot.slane %v927, 1
        %v1021 = vrot.slane %v928, 1
        %v1022 = vrot.slane %v929, 1
        %v1023 = vrot.slane %v930, 1
        %v1024 = vrot.slane %v931, 1
        %v1025 = vrot.slane %v924, 7
        %v1026 = vrot.slane %v925, 7
        %v1027 = vrot.slane %v926, 7
        %v1028 = vrot.slane %v927, 7
        %v1029 = vrot.slane %v928, 7
        %v1030 = vrot.slane %v929, 7
        %v1031 = vrot.slane %v930, 7
        %v1032 = vrot.slane %v931, 7
        %v1033 = vsub.f32 %v1017, %v1025
        %v1034 = vsub.f32 %v1018, %v1026
        %v1035 = vsub.f32 %v1019, %v1027
        %v1036 = vsub.f32 %v1020, %v1028
        %v1037 = vsub.f32 %v1021, %v1029
        %v1038 = vsub.f32 %v1022, %v1030
        %v1039 = vsub.f32 %v1023, %v1031
        %v1040 = vsub.f32 %v1024, %v1032
        %v1041 = vmul.f32 %v1033, 4.0
        %v1042 = vmul.f32 %v1034, 4.0
        %v1043 = vmul.f32 %v1035, 4.0
        %v1044 = vmul.f32 %v1036, 4.0
        %v1045 = vmul.f32 %v1037, 4.0
        %v1046 = vmul.f32 %v1038, 4.0
        %v1047 = vmul.f32 %v1039, 4.0
        %v1048 = vmul.f32 %v1040, 4.0
        %v1049 = vadd.f32 %v1009, %v1041
        %v1050 = vadd.f32 %v1010, %v1042
        %v1051 = vadd.f32 %v1011, %v1043
        %v1052 = vadd.f32 %v1012, %v1044
        %v1053 = vadd.f32 %v1013, %v1045
        %v1054 = vadd.f32 %v1014, %v1046
        %v1055 = vadd.f32 %v1015, %v1047
        %v1056 = vadd.f32 %v1016, %v1048
        %1057 = vrot.lane.b32.xlu0 %v944, 127
        %v1058 = vpop.permute.xlu0 %1057
        %1059 = vrot.lane.b32.xlu0 %v945, 127
        %v1060 = vpop.permute.xlu0 %1059
        %1061 = vrot.lane.b32.xlu0 %v946, 127
        %v1062 = vpop.permute.xlu0 %1061
        %1063 = vrot.lane.b32.xlu0 %v947, 127
        %v1064 = vpop.permute.xlu0 %1063
        %1065 = vrot.lane.b32.xlu0 %v948, 127
        %v1066 = vpop.permute.xlu0 %1065
        %1067 = vrot.lane.b32.xlu0 %v949, 127
        %v1068 = vpop.permute.xlu0 %1067
        %1069 = vrot.lane.b32.xlu0 %v950, 127
        %v1070 = vpop.permute.xlu0 %1069
        %1071 = vrot.lane.b32.xlu0 %v951, 127
        %v1072 = vpop.permute.xlu0 %1071
        %1073 = vrot.lane.b32.xlu0 %v944, 1
        %v1074 = vpop.permute.xlu0 %1073
        %1075 = vrot.lane.b32.xlu0 %v945, 1
        %v1076 = vpop.permute.xlu0 %1075
        %1077 = vrot.lane.b32.xlu0 %v946, 1
        %v1078 = vpop.permute.xlu0 %1077
        %1079 = vrot.lane.b32.xlu0 %v947, 1
        %v1080 = vpop.permute.xlu0 %1079
        %1081 = vrot.lane.b32.xlu0 %v948, 1
        %v1082 = vpop.permute.xlu0 %1081
        %1083 = vrot.lane.b32.xlu0 %v949, 1
        %v1084 = vpop.permute.xlu0 %1083
        %1085 = vrot.lane.b32.xlu0 %v950, 1
        %v1086 = vpop.permute.xlu0 %1085
        %1087 = vrot.lane.b32.xlu0 %v951, 1
        %v1088 = vpop.permute.xlu0 %1087
        %v1089 = vsub.f32 %v1058, %v1074
        %v1090 = vsub.f32 %v1060, %v1076
        %v1091 = vsub.f32 %v1062, %v1078
        %v1092 = vsub.f32 %v1064, %v1080
        %v1093 = vsub.f32 %v1066, %v1082
        %v1094 = vsub.f32 %v1068, %v1084
        %v1095 = vsub.f32 %v1070, %v1086
        %v1096 = vsub.f32 %v1072, %v1088
        %v1097 = vmul.f32 %v1089, 64.0
        %v1098 = vmul.f32 %v1090, 64.0
        %v1099 = vmul.f32 %v1091, 64.0
        %v1100 = vmul.f32 %v1092, 64.0
        %v1101 = vmul.f32 %v1093, 64.0
        %v1102 = vmul.f32 %v1094, 64.0
        %v1103 = vmul.f32 %v1095, 64.0
        %v1104 = vmul.f32 %v1096, 64.0
        %v1105 = vadd.f32 %v1049, %v1097
        %v1106 = vadd.f32 %v1050, %v1098
        %v1107 = vadd.f32 %v1051, %v1099
        %v1108 = vadd.f32 %v1052, %v1100
        %v1109 = vadd.f32 %v1053, %v1101
        %v1110 = vadd.f32 %v1054, %v1102
        %v1111 = vadd.f32 %v1055, %v1103
        %v1112 = vadd.f32 %v1056, %v1104
        %v1113 = vsub.f32 %v925, %v923
        %v1114 = vsub.f32 %v926, %v924
        %v1115 = vsub.f32 %v927, %v925
        %v1116 = vsub.f32 %v928, %v926
        %v1117 = vsub.f32 %v929, %v927
        %v1118 = vsub.f32 %v930, %v928
        %v1119 = vsub.f32 %v931, %v929
        %v1120 = vsub.f32 %v932, %v930
        %v1121 = vmul.f32 %v1113, 8.0
        %v1122 = vmul.f32 %v1114, 8.0
        %v1123 = vmul.f32 %v1115, 8.0
        %v1124 = vmul.f32 %v1116, 8.0
        %v1125 = vmul.f32 %v1117, 8.0
        %v1126 = vmul.f32 %v1118, 8.0
        %v1127 = vmul.f32 %v1119, 8.0
        %v1128 = vmul.f32 %v1120, 8.0
        %v1129 = vrot.slane %v961, 1
        %v1130 = vrot.slane %v962, 1
        %v1131 = vrot.slane %v963, 1
        %v1132 = vrot.slane %v964, 1
        %v1133 = vrot.slane %v965, 1
        %v1134 = vrot.slane %v966, 1
        %v1135 = vrot.slane %v967, 1
        %v1136 = vrot.slane %v968, 1
        %v1137 = vrot.slane %v961, 7
        %v1138 = vrot.slane %v962, 7
        %v1139 = vrot.slane %v963, 7
        %v1140 = vrot.slane %v964, 7
        %v1141 = vrot.slane %v965, 7
        %v1142 = vrot.slane %v966, 7
        %v1143 = vrot.slane %v967, 7
        %v1144 = vrot.slane %v968, 7
        %v1145 = vsub.f32 %v1129, %v1137
        %v1146 = vsub.f32 %v1130, %v1138
        %v1147 = vsub.f32 %v1131, %v1139
        %v1148 = vsub.f32 %v1132, %v1140
        %v1149 = vsub.f32 %v1133, %v1141
        %v1150 = vsub.f32 %v1134, %v1142
        %v1151 = vsub.f32 %v1135, %v1143
        %v1152 = vsub.f32 %v1136, %v1144
        %v1153 = vmul.f32 %v1145, 4.0
        %v1154 = vmul.f32 %v1146, 4.0
        %v1155 = vmul.f32 %v1147, 4.0
        %v1156 = vmul.f32 %v1148, 4.0
        %v1157 = vmul.f32 %v1149, 4.0
        %v1158 = vmul.f32 %v1150, 4.0
        %v1159 = vmul.f32 %v1151, 4.0
        %v1160 = vmul.f32 %v1152, 4.0
        %v1161 = vadd.f32 %v1121, %v1153
        %v1162 = vadd.f32 %v1122, %v1154
        %v1163 = vadd.f32 %v1123, %v1155
        %v1164 = vadd.f32 %v1124, %v1156
        %v1165 = vadd.f32 %v1125, %v1157
        %v1166 = vadd.f32 %v1126, %v1158
        %v1167 = vadd.f32 %v1127, %v1159
        %v1168 = vadd.f32 %v1128, %v1160
        %1169 = vrot.lane.b32.xlu0 %v993, 127
        %v1170 = vpop.permute.xlu0 %1169
        %1171 = vrot.lane.b32.xlu0 %v994, 127
        %v1172 = vpop.permute.xlu0 %1171
        %1173 = vrot.lane.b32.xlu0 %v995, 127
        %v1174 = vpop.permute.xlu0 %1173
        %1175 = vrot.lane.b32.xlu0 %v996, 127
        %v1176 = vpop.permute.xlu0 %1175
        %1177 = vrot.lane.b32.xlu0 %v997, 127
        %v1178 = vpop.permute.xlu0 %1177
        %1179 = vrot.lane.b32.xlu0 %v998, 127
        %v1180 = vpop.permute.xlu0 %1179
        %1181 = vrot.lane.b32.xlu0 %v999, 127
        %v1182 = vpop.permute.xlu0 %1181
        %1183 = vrot.lane.b32.xlu0 %v1000, 127
        %v1184 = vpop.permute.xlu0 %1183
        %1185 = vrot.lane.b32.xlu0 %v993, 1
        %v1186 = vpop.permute.xlu0 %1185
        %1187 = vrot.lane.b32.xlu0 %v994, 1
        %v1188 = vpop.permute.xlu0 %1187
        %1189 = vrot.lane.b32.xlu0 %v995, 1
        %v1190 = vpop.permute.xlu0 %1189
        %1191 = vrot.lane.b32.xlu0 %v996, 1
        %v1192 = vpop.permute.xlu0 %1191
        %1193 = vrot.lane.b32.xlu0 %v997, 1
        %v1194 = vpop.permute.xlu0 %1193
        %1195 = vrot.lane.b32.xlu0 %v998, 1
        %v1196 = vpop.permute.xlu0 %1195
        %1197 = vrot.lane.b32.xlu0 %v999, 1
        %v1198 = vpop.permute.xlu0 %1197
        %1199 = vrot.lane.b32.xlu0 %v1000, 1
        %v1200 = vpop.permute.xlu0 %1199
        %v1201 = vsub.f32 %v1170, %v1186
        %v1202 = vsub.f32 %v1172, %v1188
        %v1203 = vsub.f32 %v1174, %v1190
        %v1204 = vsub.f32 %v1176, %v1192
        %v1205 = vsub.f32 %v1178, %v1194
        %v1206 = vsub.f32 %v1180, %v1196
        %v1207 = vsub.f32 %v1182, %v1198
        %v1208 = vsub.f32 %v1184, %v1200
        %v1209 = vmul.f32 %v1201, 64.0
        %v1210 = vmul.f32 %v1202, 64.0
        %v1211 = vmul.f32 %v1203, 64.0
        %v1212 = vmul.f32 %v1204, 64.0
        %v1213 = vmul.f32 %v1205, 64.0
        %v1214 = vmul.f32 %v1206, 64.0
        %v1215 = vmul.f32 %v1207, 64.0
        %v1216 = vmul.f32 %v1208, 64.0
        %v1217 = vadd.f32 %v1161, %v1209
        %v1218 = vadd.f32 %v1162, %v1210
        %v1219 = vadd.f32 %v1163, %v1211
        %v1220 = vadd.f32 %v1164, %v1212
        %v1221 = vadd.f32 %v1165, %v1213
        %v1222 = vadd.f32 %v1166, %v1214
        %v1223 = vadd.f32 %v1167, %v1215
        %v1224 = vadd.f32 %v1168, %v1216
        %v1225 = vsub.f32 %v945, %v943
        %v1226 = vsub.f32 %v946, %v944
        %v1227 = vsub.f32 %v947, %v945
        %v1228 = vsub.f32 %v948, %v946
        %v1229 = vsub.f32 %v949, %v947
        %v1230 = vsub.f32 %v950, %v948
        %v1231 = vsub.f32 %v951, %v949
        %v1232 = vsub.f32 %v952, %v950
        %v1233 = vmul.f32 %v1225, 8.0
        %v1234 = vmul.f32 %v1226, 8.0
        %v1235 = vmul.f32 %v1227, 8.0
        %v1236 = vmul.f32 %v1228, 8.0
        %v1237 = vmul.f32 %v1229, 8.0
        %v1238 = vmul.f32 %v1230, 8.0
        %v1239 = vmul.f32 %v1231, 8.0
        %v1240 = vmul.f32 %v1232, 8.0
        %v1241 = vrot.slane %v993, 1
        %v1242 = vrot.slane %v994, 1
        %v1243 = vrot.slane %v995, 1
        %v1244 = vrot.slane %v996, 1
        %v1245 = vrot.slane %v997, 1
        %v1246 = vrot.slane %v998, 1
        %v1247 = vrot.slane %v999, 1
        %v1248 = vrot.slane %v1000, 1
        %v1249 = vrot.slane %v993, 7
        %v1250 = vrot.slane %v994, 7
        %v1251 = vrot.slane %v995, 7
        %v1252 = vrot.slane %v996, 7
        %v1253 = vrot.slane %v997, 7
        %v1254 = vrot.slane %v998, 7
        %v1255 = vrot.slane %v999, 7
        %v1256 = vrot.slane %v1000, 7
        %v1257 = vsub.f32 %v1241, %v1249
        %v1258 = vsub.f32 %v1242, %v1250
        %v1259 = vsub.f32 %v1243, %v1251
        %v1260 = vsub.f32 %v1244, %v1252
        %v1261 = vsub.f32 %v1245, %v1253
        %v1262 = vsub.f32 %v1246, %v1254
        %v1263 = vsub.f32 %v1247, %v1255
        %v1264 = vsub.f32 %v1248, %v1256
        %v1265 = vmul.f32 %v1257, 4.0
        %v1266 = vmul.f32 %v1258, 4.0
        %v1267 = vmul.f32 %v1259, 4.0
        %v1268 = vmul.f32 %v1260, 4.0
        %v1269 = vmul.f32 %v1261, 4.0
        %v1270 = vmul.f32 %v1262, 4.0
        %v1271 = vmul.f32 %v1263, 4.0
        %v1272 = vmul.f32 %v1264, 4.0
        %v1273 = vadd.f32 %v1233, %v1265
        %v1274 = vadd.f32 %v1234, %v1266
        %v1275 = vadd.f32 %v1235, %v1267
        %v1276 = vadd.f32 %v1236, %v1268
        %v1277 = vadd.f32 %v1237, %v1269
        %v1278 = vadd.f32 %v1238, %v1270
        %v1279 = vadd.f32 %v1239, %v1271
        %v1280 = vadd.f32 %v1240, %v1272
        %1281 = vrot.lane.b32.xlu0 %v977, 127
        %v1282 = vpop.permute.xlu0 %1281
        %1283 = vrot.lane.b32.xlu0 %v978, 127
        %v1284 = vpop.permute.xlu0 %1283
        %1285 = vrot.lane.b32.xlu0 %v979, 127
        %v1286 = vpop.permute.xlu0 %1285
        %1287 = vrot.lane.b32.xlu0 %v980, 127
        %v1288 = vpop.permute.xlu0 %1287
        %1289 = vrot.lane.b32.xlu0 %v981, 127
        %v1290 = vpop.permute.xlu0 %1289
        %1291 = vrot.lane.b32.xlu0 %v982, 127
        %v1292 = vpop.permute.xlu0 %1291
        %1293 = vrot.lane.b32.xlu0 %v983, 127
        %v1294 = vpop.permute.xlu0 %1293
        %1295 = vrot.lane.b32.xlu0 %v984, 127
        %v1296 = vpop.permute.xlu0 %1295
        %1297 = vrot.lane.b32.xlu0 %v977, 1
        %v1298 = vpop.permute.xlu0 %1297
        %1299 = vrot.lane.b32.xlu0 %v978, 1
        %v1300 = vpop.permute.xlu0 %1299
        %1301 = vrot.lane.b32.xlu0 %v979, 1
        %v1302 = vpop.permute.xlu0 %1301
        %1303 = vrot.lane.b32.xlu0 %v980, 1
        %v1304 = vpop.permute.xlu0 %1303
        %1305 = vrot.lane.b32.xlu0 %v981, 1
        %v1306 = vpop.permute.xlu0 %1305
        %1307 = vrot.lane.b32.xlu0 %v982, 1
        %v1308 = vpop.permute.xlu0 %1307
        %1309 = vrot.lane.b32.xlu0 %v983, 1
        %v1310 = vpop.permute.xlu0 %1309
        %1311 = vrot.lane.b32.xlu0 %v984, 1
        %v1312 = vpop.permute.xlu0 %1311
        %v1313 = vsub.f32 %v1282, %v1298
        %v1314 = vsub.f32 %v1284, %v1300
        %v1315 = vsub.f32 %v1286, %v1302
        %v1316 = vsub.f32 %v1288, %v1304
        %v1317 = vsub.f32 %v1290, %v1306
        %v1318 = vsub.f32 %v1292, %v1308
        %v1319 = vsub.f32 %v1294, %v1310
        %v1320 = vsub.f32 %v1296, %v1312
        %v1321 = vmul.f32 %v1313, 64.0
        %v1322 = vmul.f32 %v1314, 64.0
        %v1323 = vmul.f32 %v1315, 64.0
        %v1324 = vmul.f32 %v1316, 64.0
        %v1325 = vmul.f32 %v1317, 64.0
        %v1326 = vmul.f32 %v1318, 64.0
        %v1327 = vmul.f32 %v1319, 64.0
        %v1328 = vmul.f32 %v1320, 64.0
        %v1329 = vadd.f32 %v1273, %v1321
        %v1330 = vadd.f32 %v1274, %v1322
        %v1331 = vadd.f32 %v1275, %v1323
        %v1332 = vadd.f32 %v1276, %v1324
        %v1333 = vadd.f32 %v1277, %v1325
        %v1334 = vadd.f32 %v1278, %v1326
        %v1335 = vadd.f32 %v1279, %v1327
        %v1336 = vadd.f32 %v1280, %v1328
        %v1337 = vmul.f32 %v903, %v370
        %v1338 = vmul.f32 %v904, %v361
        %v1339 = vmul.f32 %v905, %v362
        %v1340 = vmul.f32 %v906, %v363
        %v1341 = vmul.f32 %v907, %v364
        %v1342 = vmul.f32 %v908, %v365
        %v1343 = vmul.f32 %v909, %v366
        %v1344 = vmul.f32 %v910, %v367
        %v1345 = vmul.f32 %v911, %v368
        %v1346 = vmul.f32 %v912, %v371
        %v1347 = vmul.f32 %v923, %v384
        %v1348 = vmul.f32 %v924, %v374
        %v1349 = vmul.f32 %v925, %v375
        %v1350 = vmul.f32 %v926, %v376
        %v1351 = vmul.f32 %v927, %v377
        %v1352 = vmul.f32 %v928, %v378
        %v1353 = vmul.f32 %v929, %v379
        %v1354 = vmul.f32 %v930, %v380
        %v1355 = vmul.f32 %v931, %v381
        %v1356 = vmul.f32 %v932, %v385
        %v1357 = vadd.f32 %v1337, %v1347
        %v1358 = vadd.f32 %v1338, %v1348
        %v1359 = vadd.f32 %v1339, %v1349
        %v1360 = vadd.f32 %v1340, %v1350
        %v1361 = vadd.f32 %v1341, %v1351
        %v1362 = vadd.f32 %v1342, %v1352
        %v1363 = vadd.f32 %v1343, %v1353
        %v1364 = vadd.f32 %v1344, %v1354
        %v1365 = vadd.f32 %v1345, %v1355
        %v1366 = vadd.f32 %v1346, %v1356
        %v1367 = vmul.f32 %v943, %v398
        %v1368 = vmul.f32 %v944, %v388
        %v1369 = vmul.f32 %v945, %v389
        %v1370 = vmul.f32 %v946, %v390
        %v1371 = vmul.f32 %v947, %v391
        %v1372 = vmul.f32 %v948, %v392
        %v1373 = vmul.f32 %v949, %v393
        %v1374 = vmul.f32 %v950, %v394
        %v1375 = vmul.f32 %v951, %v395
        %v1376 = vmul.f32 %v952, %v399
        %v1377 = vadd.f32 %v1357, %v1367
        %v1378 = vadd.f32 %v1358, %v1368
        %v1379 = vadd.f32 %v1359, %v1369
        %v1380 = vadd.f32 %v1360, %v1370
        %v1381 = vadd.f32 %v1361, %v1371
        %v1382 = vadd.f32 %v1362, %v1372
        %v1383 = vadd.f32 %v1363, %v1373
        %v1384 = vadd.f32 %v1364, %v1374
        %v1385 = vadd.f32 %v1365, %v1375
        %v1386 = vadd.f32 %v1366, %v1376
        %v1387 = vmul.f32 %v473, %v553
        %v1388 = vmul.f32 %v474, %v554
        %v1389 = vmul.f32 %v475, %v555
        %v1390 = vmul.f32 %v476, %v556
        %v1391 = vmul.f32 %v477, %v557
        %v1392 = vmul.f32 %v478, %v558
        %v1393 = vmul.f32 %v479, %v559
        %v1394 = vmul.f32 %v480, %v560
        %v1395 = vmul.f32 %v481, %v561
        %v1396 = vmul.f32 %v482, %v562
        %v1397 = vadd.f32 %v1377, %v1387
        %v1398 = vadd.f32 %v1378, %v1388
        %v1399 = vadd.f32 %v1379, %v1389
        %v1400 = vadd.f32 %v1380, %v1390
        %v1401 = vadd.f32 %v1381, %v1391
        %v1402 = vadd.f32 %v1382, %v1392
        %v1403 = vadd.f32 %v1383, %v1393
        %v1404 = vadd.f32 %v1384, %v1394
        %v1405 = vadd.f32 %v1385, %v1395
        %v1406 = vadd.f32 %v1386, %v1396
        %v1407 = vmul.f32 %v924, %v361
        %v1408 = vmul.f32 %v925, %v362
        %v1409 = vmul.f32 %v926, %v363
        %v1410 = vmul.f32 %v927, %v364
        %v1411 = vmul.f32 %v928, %v365
        %v1412 = vmul.f32 %v929, %v366
        %v1413 = vmul.f32 %v930, %v367
        %v1414 = vmul.f32 %v931, %v368
        %v1415 = vmul.f32 %v961, %v374
        %v1416 = vmul.f32 %v962, %v375
        %v1417 = vmul.f32 %v963, %v376
        %v1418 = vmul.f32 %v964, %v377
        %v1419 = vmul.f32 %v965, %v378
        %v1420 = vmul.f32 %v966, %v379
        %v1421 = vmul.f32 %v967, %v380
        %v1422 = vmul.f32 %v968, %v381
        %v1423 = vadd.f32 %v1407, %v1415
        %v1424 = vadd.f32 %v1408, %v1416
        %v1425 = vadd.f32 %v1409, %v1417
        %v1426 = vadd.f32 %v1410, %v1418
        %v1427 = vadd.f32 %v1411, %v1419
        %v1428 = vadd.f32 %v1412, %v1420
        %v1429 = vadd.f32 %v1413, %v1421
        %v1430 = vadd.f32 %v1414, %v1422
        %v1431 = vmul.f32 %v993, %v388
        %v1432 = vmul.f32 %v994, %v389
        %v1433 = vmul.f32 %v995, %v390
        %v1434 = vmul.f32 %v996, %v391
        %v1435 = vmul.f32 %v997, %v392
        %v1436 = vmul.f32 %v998, %v393
        %v1437 = vmul.f32 %v999, %v394
        %v1438 = vmul.f32 %v1000, %v395
        %v1439 = vadd.f32 %v1423, %v1431
        %v1440 = vadd.f32 %v1424, %v1432
        %v1441 = vadd.f32 %v1425, %v1433
        %v1442 = vadd.f32 %v1426, %v1434
        %v1443 = vadd.f32 %v1427, %v1435
        %v1444 = vadd.f32 %v1428, %v1436
        %v1445 = vadd.f32 %v1429, %v1437
        %v1446 = vadd.f32 %v1430, %v1438
        %v1447 = vrot.slane %v401, 1
        %v1448 = vrot.slane %v402, 1
        %v1449 = vrot.slane %v403, 1
        %v1450 = vrot.slane %v404, 1
        %v1451 = vrot.slane %v405, 1
        %v1452 = vrot.slane %v406, 1
        %v1453 = vrot.slane %v407, 1
        %v1454 = vrot.slane %v408, 1
        %v1455 = vrot.slane %v401, 7
        %v1456 = vrot.slane %v402, 7
        %v1457 = vrot.slane %v403, 7
        %v1458 = vrot.slane %v404, 7
        %v1459 = vrot.slane %v405, 7
        %v1460 = vrot.slane %v406, 7
        %v1461 = vrot.slane %v407, 7
        %v1462 = vrot.slane %v408, 7
        %v1463 = vsub.f32 %v1447, %v1455
        %v1464 = vsub.f32 %v1448, %v1456
        %v1465 = vsub.f32 %v1449, %v1457
        %v1466 = vsub.f32 %v1450, %v1458
        %v1467 = vsub.f32 %v1451, %v1459
        %v1468 = vsub.f32 %v1452, %v1460
        %v1469 = vsub.f32 %v1453, %v1461
        %v1470 = vsub.f32 %v1454, %v1462
        %v1471 = vmul.f32 %v1463, 4.0
        %v1472 = vmul.f32 %v1464, 4.0
        %v1473 = vmul.f32 %v1465, 4.0
        %v1474 = vmul.f32 %v1466, 4.0
        %v1475 = vmul.f32 %v1467, 4.0
        %v1476 = vmul.f32 %v1468, 4.0
        %v1477 = vmul.f32 %v1469, 4.0
        %v1478 = vmul.f32 %v1470, 4.0
        %v1479 = vmul.f32 %v474, %v1471
        %v1480 = vmul.f32 %v475, %v1472
        %v1481 = vmul.f32 %v476, %v1473
        %v1482 = vmul.f32 %v477, %v1474
        %v1483 = vmul.f32 %v478, %v1475
        %v1484 = vmul.f32 %v479, %v1476
        %v1485 = vmul.f32 %v480, %v1477
        %v1486 = vmul.f32 %v481, %v1478
        %v1487 = vadd.f32 %v1439, %v1479
        %v1488 = vadd.f32 %v1440, %v1480
        %v1489 = vadd.f32 %v1441, %v1481
        %v1490 = vadd.f32 %v1442, %v1482
        %v1491 = vadd.f32 %v1443, %v1483
        %v1492 = vadd.f32 %v1444, %v1484
        %v1493 = vadd.f32 %v1445, %v1485
        %v1494 = vadd.f32 %v1446, %v1486
        %v1495 = vmul.f32 %v944, %v361
        %v1496 = vmul.f32 %v945, %v362
        %v1497 = vmul.f32 %v946, %v363
        %v1498 = vmul.f32 %v947, %v364
        %v1499 = vmul.f32 %v948, %v365
        %v1500 = vmul.f32 %v949, %v366
        %v1501 = vmul.f32 %v950, %v367
        %v1502 = vmul.f32 %v951, %v368
        %v1503 = vmul.f32 %v993, %v374
        %v1504 = vmul.f32 %v994, %v375
        %v1505 = vmul.f32 %v995, %v376
        %v1506 = vmul.f32 %v996, %v377
        %v1507 = vmul.f32 %v997, %v378
        %v1508 = vmul.f32 %v998, %v379
        %v1509 = vmul.f32 %v999, %v380
        %v1510 = vmul.f32 %v1000, %v381
        %v1511 = vadd.f32 %v1495, %v1503
        %v1512 = vadd.f32 %v1496, %v1504
        %v1513 = vadd.f32 %v1497, %v1505
        %v1514 = vadd.f32 %v1498, %v1506
        %v1515 = vadd.f32 %v1499, %v1507
        %v1516 = vadd.f32 %v1500, %v1508
        %v1517 = vadd.f32 %v1501, %v1509
        %v1518 = vadd.f32 %v1502, %v1510
        %v1519 = vmul.f32 %v977, %v388
        %v1520 = vmul.f32 %v978, %v389
        %v1521 = vmul.f32 %v979, %v390
        %v1522 = vmul.f32 %v980, %v391
        %v1523 = vmul.f32 %v981, %v392
        %v1524 = vmul.f32 %v982, %v393
        %v1525 = vmul.f32 %v983, %v394
        %v1526 = vmul.f32 %v984, %v395
        %v1527 = vadd.f32 %v1511, %v1519
        %v1528 = vadd.f32 %v1512, %v1520
        %v1529 = vadd.f32 %v1513, %v1521
        %v1530 = vadd.f32 %v1514, %v1522
        %v1531 = vadd.f32 %v1515, %v1523
        %v1532 = vadd.f32 %v1516, %v1524
        %v1533 = vadd.f32 %v1517, %v1525
        %v1534 = vadd.f32 %v1518, %v1526
        %1535 = vrot.lane.b32.xlu0 %v401, 127
        %v1536 = vpop.permute.xlu0 %1535
        %1537 = vrot.lane.b32.xlu0 %v402, 127
        %v1538 = vpop.permute.xlu0 %1537
        %1539 = vrot.lane.b32.xlu0 %v403, 127
        %v1540 = vpop.permute.xlu0 %1539
        %1541 = vrot.lane.b32.xlu0 %v404, 127
        %v1542 = vpop.permute.xlu0 %1541
        %1543 = vrot.lane.b32.xlu0 %v405, 127
        %v1544 = vpop.permute.xlu0 %1543
        %1545 = vrot.lane.b32.xlu0 %v406, 127
        %v1546 = vpop.permute.xlu0 %1545
        %1547 = vrot.lane.b32.xlu0 %v407, 127
        %v1548 = vpop.permute.xlu0 %1547
        %1549 = vrot.lane.b32.xlu0 %v408, 127
        %v1550 = vpop.permute.xlu0 %1549
        %1551 = vrot.lane.b32.xlu0 %v401, 1
        %v1552 = vpop.permute.xlu0 %1551
        %1553 = vrot.lane.b32.xlu0 %v402, 1
        %v1554 = vpop.permute.xlu0 %1553
        %1555 = vrot.lane.b32.xlu0 %v403, 1
        %v1556 = vpop.permute.xlu0 %1555
        %1557 = vrot.lane.b32.xlu0 %v404, 1
        %v1558 = vpop.permute.xlu0 %1557
        %1559 = vrot.lane.b32.xlu0 %v405, 1
        %v1560 = vpop.permute.xlu0 %1559
        %1561 = vrot.lane.b32.xlu0 %v406, 1
        %v1562 = vpop.permute.xlu0 %1561
        %1563 = vrot.lane.b32.xlu0 %v407, 1
        %v1564 = vpop.permute.xlu0 %1563
        %1565 = vrot.lane.b32.xlu0 %v408, 1
        %v1566 = vpop.permute.xlu0 %1565
        %v1567 = vsub.f32 %v1536, %v1552
        %v1568 = vsub.f32 %v1538, %v1554
        %v1569 = vsub.f32 %v1540, %v1556
        %v1570 = vsub.f32 %v1542, %v1558
        %v1571 = vsub.f32 %v1544, %v1560
        %v1572 = vsub.f32 %v1546, %v1562
        %v1573 = vsub.f32 %v1548, %v1564
        %v1574 = vsub.f32 %v1550, %v1566
        %v1575 = vmul.f32 %v1567, 64.0
        %v1576 = vmul.f32 %v1568, 64.0
        %v1577 = vmul.f32 %v1569, 64.0
        %v1578 = vmul.f32 %v1570, 64.0
        %v1579 = vmul.f32 %v1571, 64.0
        %v1580 = vmul.f32 %v1572, 64.0
        %v1581 = vmul.f32 %v1573, 64.0
        %v1582 = vmul.f32 %v1574, 64.0
        %v1583 = vmul.f32 %v474, %v1575
        %v1584 = vmul.f32 %v475, %v1576
        %v1585 = vmul.f32 %v476, %v1577
        %v1586 = vmul.f32 %v477, %v1578
        %v1587 = vmul.f32 %v478, %v1579
        %v1588 = vmul.f32 %v479, %v1580
        %v1589 = vmul.f32 %v480, %v1581
        %v1590 = vmul.f32 %v481, %v1582
        %v1591 = vadd.f32 %v1527, %v1583
        %v1592 = vadd.f32 %v1528, %v1584
        %v1593 = vadd.f32 %v1529, %v1585
        %v1594 = vadd.f32 %v1530, %v1586
        %v1595 = vadd.f32 %v1531, %v1587
        %v1596 = vadd.f32 %v1532, %v1588
        %v1597 = vadd.f32 %v1533, %v1589
        %v1598 = vadd.f32 %v1534, %v1590
        %v1599 = vsub.f32 %v1399, %v1397
        %v1600 = vsub.f32 %v1400, %v1398
        %v1601 = vsub.f32 %v1401, %v1399
        %v1602 = vsub.f32 %v1402, %v1400
        %v1603 = vsub.f32 %v1403, %v1401
        %v1604 = vsub.f32 %v1404, %v1402
        %v1605 = vsub.f32 %v1405, %v1403
        %v1606 = vsub.f32 %v1406, %v1404
        %v1607 = vmul.f32 %v1599, 8.0
        %v1608 = vmul.f32 %v1600, 8.0
        %v1609 = vmul.f32 %v1601, 8.0
        %v1610 = vmul.f32 %v1602, 8.0
        %v1611 = vmul.f32 %v1603, 8.0
        %v1612 = vmul.f32 %v1604, 8.0
        %v1613 = vmul.f32 %v1605, 8.0
        %v1614 = vmul.f32 %v1606, 8.0
        %v1615 = vrot.slane %v1487, 1
        %v1616 = vrot.slane %v1488, 1
        %v1617 = vrot.slane %v1489, 1
        %v1618 = vrot.slane %v1490, 1
        %v1619 = vrot.slane %v1491, 1
        %v1620 = vrot.slane %v1492, 1
        %v1621 = vrot.slane %v1493, 1
        %v1622 = vrot.slane %v1494, 1
        %v1623 = vrot.slane %v1487, 7
        %v1624 = vrot.slane %v1488, 7
        %v1625 = vrot.slane %v1489, 7
        %v1626 = vrot.slane %v1490, 7
        %v1627 = vrot.slane %v1491, 7
        %v1628 = vrot.slane %v1492, 7
        %v1629 = vrot.slane %v1493, 7
        %v1630 = vrot.slane %v1494, 7
        %v1631 = vsub.f32 %v1615, %v1623
        %v1632 = vsub.f32 %v1616, %v1624
        %v1633 = vsub.f32 %v1617, %v1625
        %v1634 = vsub.f32 %v1618, %v1626
        %v1635 = vsub.f32 %v1619, %v1627
        %v1636 = vsub.f32 %v1620, %v1628
        %v1637 = vsub.f32 %v1621, %v1629
        %v1638 = vsub.f32 %v1622, %v1630
        %v1639 = vmul.f32 %v1631, 4.0
        %v1640 = vmul.f32 %v1632, 4.0
        %v1641 = vmul.f32 %v1633, 4.0
        %v1642 = vmul.f32 %v1634, 4.0
        %v1643 = vmul.f32 %v1635, 4.0
        %v1644 = vmul.f32 %v1636, 4.0
        %v1645 = vmul.f32 %v1637, 4.0
        %v1646 = vmul.f32 %v1638, 4.0
        %v1647 = vadd.f32 %v1607, %v1639
        %v1648 = vadd.f32 %v1608, %v1640
        %v1649 = vadd.f32 %v1609, %v1641
        %v1650 = vadd.f32 %v1610, %v1642
        %v1651 = vadd.f32 %v1611, %v1643
        %v1652 = vadd.f32 %v1612, %v1644
        %v1653 = vadd.f32 %v1613, %v1645
        %v1654 = vadd.f32 %v1614, %v1646
        %1655 = vrot.lane.b32.xlu0 %v1591, 127
        %v1656 = vpop.permute.xlu0 %1655
        %1657 = vrot.lane.b32.xlu0 %v1592, 127
        %v1658 = vpop.permute.xlu0 %1657
        %1659 = vrot.lane.b32.xlu0 %v1593, 127
        %v1660 = vpop.permute.xlu0 %1659
        %1661 = vrot.lane.b32.xlu0 %v1594, 127
        %v1662 = vpop.permute.xlu0 %1661
        %1663 = vrot.lane.b32.xlu0 %v1595, 127
        %v1664 = vpop.permute.xlu0 %1663
        %1665 = vrot.lane.b32.xlu0 %v1596, 127
        %v1666 = vpop.permute.xlu0 %1665
        %1667 = vrot.lane.b32.xlu0 %v1597, 127
        %v1668 = vpop.permute.xlu0 %1667
        %1669 = vrot.lane.b32.xlu0 %v1598, 127
        %v1670 = vpop.permute.xlu0 %1669
        %1671 = vrot.lane.b32.xlu0 %v1591, 1
        %v1672 = vpop.permute.xlu0 %1671
        %1673 = vrot.lane.b32.xlu0 %v1592, 1
        %v1674 = vpop.permute.xlu0 %1673
        %1675 = vrot.lane.b32.xlu0 %v1593, 1
        %v1676 = vpop.permute.xlu0 %1675
        %1677 = vrot.lane.b32.xlu0 %v1594, 1
        %v1678 = vpop.permute.xlu0 %1677
        %1679 = vrot.lane.b32.xlu0 %v1595, 1
        %v1680 = vpop.permute.xlu0 %1679
        %1681 = vrot.lane.b32.xlu0 %v1596, 1
        %v1682 = vpop.permute.xlu0 %1681
        %1683 = vrot.lane.b32.xlu0 %v1597, 1
        %v1684 = vpop.permute.xlu0 %1683
        %1685 = vrot.lane.b32.xlu0 %v1598, 1
        %v1686 = vpop.permute.xlu0 %1685
        %v1687 = vsub.f32 %v1656, %v1672
        %v1688 = vsub.f32 %v1658, %v1674
        %v1689 = vsub.f32 %v1660, %v1676
        %v1690 = vsub.f32 %v1662, %v1678
        %v1691 = vsub.f32 %v1664, %v1680
        %v1692 = vsub.f32 %v1666, %v1682
        %v1693 = vsub.f32 %v1668, %v1684
        %v1694 = vsub.f32 %v1670, %v1686
        %v1695 = vmul.f32 %v1687, 64.0
        %v1696 = vmul.f32 %v1688, 64.0
        %v1697 = vmul.f32 %v1689, 64.0
        %v1698 = vmul.f32 %v1690, 64.0
        %v1699 = vmul.f32 %v1691, 64.0
        %v1700 = vmul.f32 %v1692, 64.0
        %v1701 = vmul.f32 %v1693, 64.0
        %v1702 = vmul.f32 %v1694, 64.0
        %v1703 = vadd.f32 %v1647, %v1695
        %v1704 = vadd.f32 %v1648, %v1696
        %v1705 = vadd.f32 %v1649, %v1697
        %v1706 = vadd.f32 %v1650, %v1698
        %v1707 = vadd.f32 %v1651, %v1699
        %v1708 = vadd.f32 %v1652, %v1700
        %v1709 = vadd.f32 %v1653, %v1701
        %v1710 = vadd.f32 %v1654, %v1702
        %1711 = vst [vmem:[%s357] sm:$0xff] %v1105
        %1712 = vst [vmem:[%s357 + $0x8] sm:$0xff] %v1106
        %1713 = vst [vmem:[%s357 + $0x10] sm:$0xff] %v1107
        %1714 = vst [vmem:[%s357 + $0x18] sm:$0xff] %v1108
        %1715 = vst [vmem:[%s357 + $0x20] sm:$0xff] %v1109
        %1716 = vst [vmem:[%s357 + $0x28] sm:$0xff] %v1110
        %1717 = vst [vmem:[%s357 + $0x30] sm:$0xff] %v1111
        %1718 = vst [vmem:[%s357 + $0x38] sm:$0xff] %v1112
        %s1719 = scalar_lea.vmem %s357, 64 [#allocation10]
        %1720 = vst [vmem:[%s1719] sm:$0xff] %v1217
        %1721 = vst [vmem:[%s1719 + $0x8] sm:$0xff] %v1218
        %1722 = vst [vmem:[%s1719 + $0x10] sm:$0xff] %v1219
        %1723 = vst [vmem:[%s1719 + $0x18] sm:$0xff] %v1220
        %1724 = vst [vmem:[%s1719 + $0x20] sm:$0xff] %v1221
        %1725 = vst [vmem:[%s1719 + $0x28] sm:$0xff] %v1222
        %1726 = vst [vmem:[%s1719 + $0x30] sm:$0xff] %v1223
        %1727 = vst [vmem:[%s1719 + $0x38] sm:$0xff] %v1224
        %s1728 = scalar_lea.vmem %s357, 128 [#allocation10]
        %1729 = vst [vmem:[%s1728] sm:$0xff] %v1329
        %1730 = vst [vmem:[%s1728 + $0x8] sm:$0xff] %v1330
        %1731 = vst [vmem:[%s1728 + $0x10] sm:$0xff] %v1331
        %1732 = vst [vmem:[%s1728 + $0x18] sm:$0xff] %v1332
        %1733 = vst [vmem:[%s1728 + $0x20] sm:$0xff] %v1333
        %1734 = vst [vmem:[%s1728 + $0x28] sm:$0xff] %v1334
        %1735 = vst [vmem:[%s1728 + $0x30] sm:$0xff] %v1335
        %1736 = vst [vmem:[%s1728 + $0x38] sm:$0xff] %v1336
        %s1737 = scalar_lea.vmem %s357, 192 [#allocation10]
        %1738 = vst [vmem:[%s1737] sm:$0xff] %v1703
        %1739 = vst [vmem:[%s1737 + $0x8] sm:$0xff] %v1704
        %1740 = vst [vmem:[%s1737 + $0x10] sm:$0xff] %v1705
        %1741 = vst [vmem:[%s1737 + $0x18] sm:$0xff] %v1706
        %1742 = vst [vmem:[%s1737 + $0x20] sm:$0xff] %v1707
        %1743 = vst [vmem:[%s1737 + $0x28] sm:$0xff] %v1708
        %1744 = vst [vmem:[%s1737 + $0x30] sm:$0xff] %v1709
        %1745 = vst [vmem:[%s1737 + $0x38] sm:$0xff] %v1710
        %s1746 = sand.u32 %s139, 1
        %s1747 = scalar_lea.sflag [#allocation4], %s1746
        %s1748 = sand.u32 %s139, 1
        %s1749 = smul.addr %s1748, 256
        %s1750 = scalar_lea.vmem [#allocation10], %s1749
        // Predicated region
        $region53: #{tpu_custom_call.1} parent=35 // pred_check
          %p1751 = pneg %p149
        $region54: #{tpu_custom_call.1} parent=35 // pred_check_branch
          %1753 = sbr.rel (%p1751) target = $region56
        $region55: #{tpu_custom_call.1} parent=35 // pred_region
          #allocation14 [shape = 'u32[6]{0}', space=smem, size = 0x18, scoped, tag = 'DMA stride descriptor']
          %s1754 = smul.u32 8, %s27
          %s1756 = ssub.s32 4096, 4096
          %1757 = vsyncadd %s1747, %s1756
          %s1758 = smul.addr %s1754, 128
          %s1759 = scalar_lea.hbm %s4, %s1758
          %s1761 = sshll.u32 1, 14
          %s1762 = sxor.u32 4294967295, %s1761
          %s1765 = sshll.u32 7, 18
          %s1766 = sxor.u32 4294967295, %s1765
          %s1767 = sand.u32 0, %s1766
          %s1769 = sor.u32 %s1767, 0
          %s1771 = sshll.u32 3, 24
          %s1772 = sxor.u32 4294967295, %s1771
          %s1773 = sand.u32 %s1769, %s1772
          %s1775 = sor.u32 %s1773, 0
          %s1776 = sshll.u32 %s1750, 4
          %s1777 = int_to_ptr.vmem [resolvable:$true] %s1776
          %1783 = sst [smem:[#allocation14]] 1024
          %s1784 = scalar_lea.smem [#allocation14], 1
          %1785 = sst [smem:[%s1784]] 2048
          %s1786 = scalar_lea.smem [#allocation14], 2
          %1787 = sst [smem:[%s1786]] 8
          %s1788 = scalar_lea.smem [#allocation14], 3
          %1789 = sst [smem:[%s1788]] 128
          %s1790 = scalar_lea.smem [#allocation14], 4
          %1791 = sst [smem:[%s1790]] 128
          %s1792 = scalar_lea.smem [#allocation14], 5
          %1793 = sst [smem:[%s1792]] 8
          %1795 = dma.general %s1777, 4096, %s1759, %s1747, [#allocation13], [#allocation14], %s1775, 0
        $region56: #{tpu_custom_call.1} parent=35 // pred_fallthru
          _
      $region36: #{tpu_custom_call.1} parent=5 // pred_fallthru
        _
      %p1796 = scmp.le.s32.totalorder 2, %s22
      // Predicated region
      $region57: #{tpu_custom_call.1} parent=5 // pred_check
        %p1797 = pneg %p1796
      $region58: #{tpu_custom_call.1} parent=5 // pred_check_branch
        %1799 = sbr.rel (%p1797) target = $region60
      $region59: #{tpu_custom_call.1} parent=5 // pred_region
        %s1800 = ssub.s32 %s22, 2
        // Predicated region
        $region61: #{tpu_custom_call.1} parent=59 // pred_check
          %p1801 = pneg %p155
        $region62: #{tpu_custom_call.1} parent=59 // pred_check_branch
          %1803 = sbr.rel (%p1801) target = $region64
        $region63: #{tpu_custom_call.1} parent=59 // pred_region
          %s1804 = sand.u32 %s140, 1
          %s1805 = scalar_lea.sflag [#allocation4], %s1804
          %s1806 = sand.u32 %s140, 1
          %s1807 = smul.addr %s1806, 256
          %s1808 = scalar_lea.vmem [#allocation10], %s1807
          %1809 = dma.done %s1805, 4096
        $region64: #{tpu_custom_call.1} parent=59 // pred_fallthru
          _
      $region60: #{tpu_custom_call.1} parent=5 // pred_fallthru
        _
    $region6: #{tpu_custom_call.1} parent=1 // loop_footer
      %s26 = sadd.s32 1, %s22
    $region7: #{tpu_custom_call.1} parent=1 // loop_footer_branch
      %21 = sbr.rel target = $region3
    $region8: #{tpu_custom_call.1} parent=1 // loop_exit
      _
    %1810 = vsyncpa [#allocation3], 1
    %s1811 = scalar_lea.sflag [#allocation3], 1
    %1812 = vsyncpa %s1811, 1
    %1813 = vsyncpa [#allocation6], 1
    %s1814 = scalar_lea.sflag [#allocation6], 1
    %1815 = vsyncpa %s1814, 1
    %1816 = vsyncpa [#allocation9], 1
    %s1817 = scalar_lea.sflag [#allocation9], 1
    %1818 = vsyncpa %s1817, 1
    %1819 = vsyncpa [#allocation4], 1
    %s1820 = scalar_lea.sflag [#allocation4], 1
    %1821 = vsyncpa %s1820, 1

</llo_original>
